<compile_context>
chip_gen: v7x
topology: tpu7x:2x2x1
jax: 0.10.0
libtpu: 0.0.40
codegen_flags: <defaults>
</compile_context>

<pallas_src>
import functools
import math
import numpy as np

import jax
import jax.numpy as jnp
from jax.experimental import pallas as pl
from jax.experimental.pallas import tpu as pltpu

PAD_IDX = 0   # BytePairEncoding.PAD_token_idx (synthetic)
SEP_IDX = 1   # BytePairEncoding.SEP_token_idx (synthetic)


# ---------------------------------------------------------------------------
# In-kernel math helpers
# ---------------------------------------------------------------------------
def _gelu_tanh(x):
    # tanh-approximation GELU: transcendental goes to the EUP slot.
    c = math.sqrt(2.0 / math.pi)
    return 0.5 * x * (1.0 + jnp.tanh(c * (x + 0.044715 * x * x * x)))


def _gelu_exact(x):
    # Exact erf GELU (reference path only, outside Pallas).
    return 0.5 * x * (1.0 + jax.lax.erf(x * (1.0 / math.sqrt(2.0))))


def _layernorm(x, gamma, beta, eps=1e-5):
    mean = jnp.mean(x, axis=-1, keepdims=True)
    var = jnp.mean(jnp.square(x - mean), axis=-1, keepdims=True)
    return (x - mean) * jax.lax.rsqrt(var + eps) * gamma + beta


# ---------------------------------------------------------------------------
# Pallas kernels
# ---------------------------------------------------------------------------
def encoder_stack_kernel(n_head,
                         x_ref, bias_ref, keep_ref,
                         wq_ref, wk_ref, wv_ref, wo_ref,
                         w1_ref, b1_ref, w2_ref, b2_ref,
                         g1_ref, be1_ref, g2_ref, be2_ref,
                         out_ref):
    """Full encoder stack. grid = (batch, layer); out_ref carries the activation
    across the (arbitrary) layer axis since its block index only depends on batch."""
    layer = pl.program_id(1)
    S, H = x_ref.shape
    DK = H // n_head
    scale = 1.0 / math.sqrt(DK)

    @pl.when(layer == 0)
    def _():
        out_ref[...] = x_ref[...]          # seed the resident activation

    x = out_ref[...]                       # (S, H) f32 — previous layer's output
    xb = x.astype(jnp.bfloat16)
    bias = bias_ref[...]                   # (1, S) additive key-pad bias (0 / -1e9)
    keep = keep_ref[...]                   # (S, 1) 1.0 for real rows, 0.0 for <PAD>

    # Full-width projections (MXU, bf16 operands, f32 accumulation).
    q = jnp.dot(xb, wq_ref[...], preferred_element_type=jnp.float32)   # (S, H)
    k = jnp.dot(xb, wk_ref[...], preferred_element_type=jnp.float32)
    v = jnp.dot(xb, wv_ref[...], preferred_element_type=jnp.float32)

    # Per-head scaled dot attention (tiny SxS tiles); one additive mask bias.
    heads = []
    for h in range(n_head):
        sl = slice(h * DK, (h + 1) * DK)
        qh = q[:, sl].astype(jnp.bfloat16)
        kh = k[:, sl].astype(jnp.bfloat16)
        vh = v[:, sl].astype(jnp.bfloat16)
        s = jnp.einsum('qd,kd->qk', qh, kh,
                       preferred_element_type=jnp.float32) * scale + bias
        smax = jnp.max(s, axis=-1, keepdims=True)
        p = jnp.exp(s - smax)
        p = p * pl.reciprocal(jnp.sum(p, axis=-1, keepdims=True), approx=True)
        heads.append(jnp.dot(p.astype(jnp.bfloat16), vh,
                             preferred_element_type=jnp.float32))
    a = jnp.concatenate(heads, axis=-1) * keep      # zero padded query rows

    # Single full-width output projection (no bias in O_linear).
    attn = jnp.dot(a.astype(jnp.bfloat16), wo_ref[...],
                   preferred_element_type=jnp.float32)

    # Residual + LayerNorm 1 (f32).
    h1 = _layernorm(attn + x, g1_ref[...], be1_ref[...])

    # Feed-forward: Linear -> GELU(tanh) -> Linear.
    ff = jnp.dot(h1.astype(jnp.bfloat16), w1_ref[...],
                 preferred_element_type=jnp.float32) + b1_ref[...]
    ff = _gelu_tanh(ff)
    ff = jnp.dot(ff.astype(jnp.bfloat16), w2_ref[...],
                 preferred_element_type=jnp.float32) + b2_ref[...]

    # Residual + LayerNorm 2, zero padded positions; feeds next layer / final out.
    out_ref[...] = _layernorm(ff + h1, g2_ref[...], be2_ref[...]) * keep


def mlm_head_kernel(x_ref, w1_ref, b1_ref, g_ref, be_ref, w2_ref, b2_ref, out_ref):
    """MLM head tile: Linear -> GELU -> LayerNorm -> Linear(vocab column tile)."""
    xb = x_ref[...].astype(jnp.bfloat16)                       # (TM, H)
    h = jnp.dot(xb, w1_ref[...], preferred_element_type=jnp.float32) + b1_ref[...]
    h = _layernorm(_gelu_tanh(h), g_ref[...], be_ref[...])
    out_ref[...] = jnp.dot(h.astype(jnp.bfloat16), w2_ref[...],
                           preferred_element_type=jnp.float32) + b2_ref[...]


def nsp_head_kernel(x_ref, w_ref, b_ref, out_ref):
    """NSP head: Linear(hidden, 2) on the first-token representations (tiny)."""
    out_ref[...] = jnp.dot(x_ref[...], w_ref[...],
                           preferred_element_type=jnp.float32) + b_ref[...]


# ---------------------------------------------------------------------------
# Parameters (deterministic synthetic init)
# ---------------------------------------------------------------------------
def init_params(key, token_num, hidden, n_head, ff_dim, num_layers,
                max_seg=3, max_len=64):
    keys = iter(jax.random.split(key, 128))

    def nrm(shape, scale=0.05):
        return (scale * jax.random.normal(next(keys), shape)).astype(jnp.float32)

    emb = nrm((token_num, hidden), 0.1).at[PAD_IDX].set(0.0)   # padding_idx row = 0
    seg = nrm((max_seg, hidden), 0.1)

    pos = np.arange(max_len, dtype=np.float32)[:, None]
    div = np.exp(np.arange(0, hidden, 2, dtype=np.float32) * (-math.log(10000.0) / hidden))
    pe = np.zeros((max_len, hidden), dtype=np.float32)
    pe[:, 0::2] = np.sin(pos * div)
    pe[:, 1::2] = np.cos(pos * div)

    layers = []
    for _ in range(num_layers):
        layers.append(dict(
            wq=nrm((hidden, hidden)), wk=nrm((hidden, hidden)),
            wv=nrm((hidden, hidden)), wo=nrm((hidden, hidden)),
            w1=nrm((hidden, ff_dim)), b1=nrm((ff_dim,), 0.01),
            w2=nrm((ff_dim, hidden)), b2=nrm((hidden,), 0.01),
            g1=jnp.ones((hidden,), jnp.float32), be1=jnp.zeros((hidden,), jnp.float32),
            g2=jnp.ones((hidden,), jnp.float32), be2=jnp.zeros((hidden,), jnp.float32),
        ))

    mlm = dict(w1=nrm((hidden, hidden)), b1=nrm((hidden,), 0.01),
               g=jnp.ones((hidden,), jnp.float32), be=jnp.zeros((hidden,), jnp.float32),
               w2=nrm((hidden, token_num)), b2=nrm((token_num,), 0.01))
    nsp = dict(w=nrm((hidden, 2)), b=nrm((2,), 0.01))
    return dict(emb=emb, seg=seg, pe=jnp.asarray(pe), layers=layers, mlm=mlm, nsp=nsp)


# ---------------------------------------------------------------------------
# Forward pass (Pallas) and pure-JAX reference
# ---------------------------------------------------------------------------
def forward(tokens, params, n_head):
    """tokens: (S, B) int32 — same convention as the PyTorch module's input."""
    S, B = tokens.shape
    H = params['emb'].shape[1]
    L = len(params['layers'])
    F = params['layers'][0]['w1'].shape[1]

    # --- embedding / positional / segment glue (plain JAX) ---
    pad = tokens == PAD_IDX                                        # (S, B)
    out = params['emb'][tokens] + params['pe'][:S][:, None, :]
    is_sep = (tokens == SEP_IDX).astype(jnp.int32)
    seg_ids = jnp.cumsum(is_sep, axis=0) - is_sep
    seg_ids = jnp.clip(seg_ids, 0, params['seg'].shape[0] - 1)     # guard >max_seg SEPs
    out = out + params['seg'][seg_ids]
    out = jnp.where(pad[..., None], 0.0, out)                      # dropout = identity

    x = jnp.transpose(out, (1, 0, 2)).astype(jnp.float32)          # (B, S, H)
    padB = jnp.transpose(pad, (1, 0))                              # (B, S)
    bias = (padB.astype(jnp.float32) * -1e9)[:, None, :]           # (B, 1, S) key bias
    keep = (1.0 - padB.astype(jnp.float32))[:, :, None]            # (B, S, 1) query keep

    # --- stack per-layer weights: (L, ...) slabs, bf16 for MXU operands ---
    lw = params['layers']
    st = lambda name: jnp.stack([lp[name] for lp in lw], 0)
    Wq, Wk = st('wq').astype(jnp.bfloat16), st('wk').astype(jnp.bfloat16)
    Wv, Wo = st('wv').astype(jnp.bfloat16), st('wo').astype(jnp.bfloat16)
    W1, W2 = st('w1').astype(jnp.bfloat16), st('w2').astype(jnp.bfloat16)
    B1, B2 = st('b1')[:, None, :], st('b2')[:, None, :]
    G1, BE1 = st('g1')[:, None, :], st('be1')[:, None, :]
    G2, BE2 = st('g2')[:, None, :], st('be2')[:, None, :]

    per_b = lambda b, l: (b, 0, 0)     # activation-side blocks: indexed by batch only
    per_l = lambda b, l: (l, 0, 0)     # weight-side blocks: indexed by layer only

    h = pl.pallas_call(
        functools.partial(encoder_stack_kernel, n_head),
        out_shape=jax.ShapeDtypeStruct((B, S, H), jnp.float32),
        grid=(B, L),
        in_specs=[
            pl.BlockSpec((None, S, H), per_b),      # x
            pl.BlockSpec((None, 1, S), per_b),      # additive key-pad bias
            pl.BlockSpec((None, S, 1), per_b),      # query keep mask
            pl.BlockSpec((None, H, H), per_l),      # Wq
            pl.BlockSpec((None, H, H), per_l),      # Wk
            pl.BlockSpec((None, H, H), per_l),      # Wv
            pl.BlockSpec((None, H, H), per_l),      # Wo
            pl.BlockSpec((None, H, F), per_l),      # W1
            pl.BlockSpec((None, 1, F), per_l),      # b1
            pl.BlockSpec((None, F, H), per_l),      # W2
            pl.BlockSpec((None, 1, H), per_l),      # b2
            pl.BlockSpec((None, 1, H), per_l),      # g1
            pl.BlockSpec((None, 1, H), per_l),      # be1
            pl.BlockSpec((None, 1, H), per_l),      # g2
            pl.BlockSpec((None, 1, H), per_l),      # be2
        ],
        out_specs=pl.BlockSpec((None, S, H), per_b),   # same block across layer axis
        compiler_params=pltpu.CompilerParams(
            dimension_semantics=("parallel", "arbitrary")),
    )(x, bias, keep, Wq, Wk, Wv, Wo, W1, B1, W2, B2, G1, BE1, G2, BE2)

    # --- MLM head: tiled grid over rows and 128-wide (padded) vocab columns ---
    N = B * S
    V = params['mlm']['w2'].shape[1]
    Vp = ((V + 127) // 128) * 128                                  # lane-dense store
    w2p = jnp.zeros((H, Vp), jnp.float32).at[:, :V].set(params['mlm']['w2'])
    b2p = jnp.zeros((1, Vp), jnp.float32).at[0, :V].set(params['mlm']['b2'])
    TILE_M = N if N <= 256 else 256
    assert N % TILE_M == 0

    mlm_p = pl.pallas_call(
        mlm_head_kernel,
        out_shape=jax.ShapeDtypeStruct((N, Vp), jnp.float32),
        grid=(N // TILE_M, Vp // 128),
        in_specs=[
            pl.BlockSpec((TILE_M, H), lambda i, j: (i, 0)),
            pl.BlockSpec((H, H), lambda i, j: (0, 0)),
            pl.BlockSpec((1, H), lambda i, j: (0, 0)),
            pl.BlockSpec((1, H), lambda i, j: (0, 0)),
            pl.BlockSpec((1, H), lambda i, j: (0, 0)),
            pl.BlockSpec((H, 128), lambda i, j: (0, j)),
            pl.BlockSpec((1, 128), lambda i, j: (0, j)),
        ],
        out_specs=pl.BlockSpec((TILE_M, 128), lambda i, j: (i, j)),
        compiler_params=pltpu.CompilerParams(
            dimension_semantics=("parallel", "parallel")),
    )(h.reshape(N, H),
      params['mlm']['w1'].astype(jnp.bfloat16), params['mlm']['b1'][None, :],
      params['mlm']['g'][None, :], params['mlm']['be'][None, :],
      w2p.astype(jnp.bfloat16), b2p)
    mlm = jnp.transpose(mlm_p[:, :V].reshape(B, S, V), (1, 0, 2))  # (S, B, token_num)

    # --- NSP head (tiny, width-2 output; single full-block call) ---
    nsp = pl.pallas_call(
        nsp_head_kernel,
        out_shape=jax.ShapeDtypeStruct((B, 2), jnp.float32),
        in_specs=[pl.BlockSpec(memory_space=pltpu.MemorySpace.VMEM)] * 3,
        out_specs=pl.BlockSpec(memory_space=pltpu.MemorySpace.VMEM),
    )(h[:, 0, :], params['nsp']['w'], params['nsp']['b'][None, :])
    return mlm, nsp


def forward_reference(tokens, params, n_head):
    """Pure-JAX (f32, exact GELU) reference mirroring the PyTorch code."""
    S, B = tokens.shape
    H = params['emb'].shape[1]
    DK = H // n_head
    pad = tokens == PAD_IDX
    out = params['emb'][tokens] + params['pe'][:S][:, None, :]
    is_sep = (tokens == SEP_IDX).astype(jnp.int32)
    out = out + params['seg'][jnp.cumsum(is_sep, 0) - is_sep]
    out = jnp.where(pad[..., None], 0.0, out)
    for lp in params['layers']:
        q = (out @ lp['wq']).reshape(S, B, n_head, DK)
        k = (out @ lp['wk']).reshape(S, B, n_head, DK)
        v = (out @ lp['wv']).reshape(S, B, n_head, DK)
        s = jnp.einsum('qbhd,kbhd->bhqk', q, k) / math.sqrt(DK)
        s = jnp.where(pad.T[:, None, None, :], -jnp.inf, s)
        p = jax.nn.softmax(s, axis=-1)
        a = jnp.einsum('bhqk,kbhd->qbhd', p, v).reshape(S, B, H)
        a = jnp.where(pad[..., None], 0.0, a)
        a = a @ lp['wo']
        h1 = _layernorm(a + out, lp['g1'], lp['be1'])
        ff = _gelu_exact(h1 @ lp['w1'] + lp['b1']) @ lp['w2'] + lp['b2']
        out = jnp.where(pad[..., None], 0.0,
                        _layernorm(ff + h1, lp['g2'], lp['be2']))
    m = params['mlm']
    mlm = _layernorm(_gelu_exact(out @ m['w1'] + m['b1']), m['g'], m['be']) @ m['w2'] + m['b2']
    nsp = out[0] @ params['nsp']['w'] + params['nsp']['b']
    return mlm, nsp


# ---------------------------------------------------------------------------
if __name__ == "__main__":
    # TODO(synk): dropout layers are identity (eval mode); no in-kernel RNG dropout.
    SEQ, BATCH, HIDDEN, N_HEAD, FF_DIM, N_LAYERS, TOKEN_NUM = 8, 2, 32, 4, 64, 2, 50

    key = jax.random.PRNGKey(0)
    pkey, tkey = jax.random.split(key)
    params = init_params(pkey, TOKEN_NUM, HIDDEN, N_HEAD, FF_DIM, N_LAYERS)

    # (seq_len, batch) token ids with a SEP and trailing PADs, like the original input.
    tokens = jax.random.randint(tkey, (SEQ, BATCH), 2, TOKEN_NUM, dtype=jnp.int32)
    tokens = tokens.at[3, :].set(SEP_IDX)
    tokens = tokens.at[6:, 0].set(PAD_IDX)
    tokens = tokens.at[7:, 1].set(PAD_IDX)

    mlm_logits, nsp_logits = forward(tokens, params, N_HEAD)
    jax.block_until_ready((mlm_logits, nsp_logits))

    assert mlm_logits.shape == (SEQ, BATCH, TOKEN_NUM)
    assert nsp_logits.shape == (BATCH, 2)

    with jax.default_matmul_precision("highest"):
        mlm_ref, nsp_ref = forward_reference(tokens, params, N_HEAD)
    assert bool(jnp.allclose(mlm_logits, mlm_ref, atol=3e-2, rtol=3e-2)), "MLM mismatch"
    assert bool(jnp.allclose(nsp_logits, nsp_ref, atol=3e-2, rtol=3e-2)), "NSP mismatch"

    print("KERNEL_OK")
</pallas_src>

<mosaic_0001>
module attributes {stable_mosaic.version = 11 : i64} {
  func.func @encoder_stack_kernel(%arg0: i32, %arg1: i32, %arg2: memref<1x8x32xf32, #tpu.memory_space<vmem>>, %arg3: memref<1x1x8xf32, #tpu.memory_space<vmem>>, %arg4: memref<1x8x1xf32, #tpu.memory_space<vmem>>, %arg5: memref<1x32x32xbf16, #tpu.memory_space<vmem>>, %arg6: memref<1x32x32xbf16, #tpu.memory_space<vmem>>, %arg7: memref<1x32x32xbf16, #tpu.memory_space<vmem>>, %arg8: memref<1x32x32xbf16, #tpu.memory_space<vmem>>, %arg9: memref<1x32x64xbf16, #tpu.memory_space<vmem>>, %arg10: memref<1x1x64xf32, #tpu.memory_space<vmem>>, %arg11: memref<1x64x32xbf16, #tpu.memory_space<vmem>>, %arg12: memref<1x1x32xf32, #tpu.memory_space<vmem>>, %arg13: memref<1x1x32xf32, #tpu.memory_space<vmem>>, %arg14: memref<1x1x32xf32, #tpu.memory_space<vmem>>, %arg15: memref<1x1x32xf32, #tpu.memory_space<vmem>>, %arg16: memref<1x1x32xf32, #tpu.memory_space<vmem>>, %arg17: memref<1x8x32xf32, #tpu.memory_space<vmem>>) attributes {dimension_semantics = [#tpu.dimension_semantics<parallel>, #tpu.dimension_semantics<arbitrary>], iteration_bounds = array<i64: 2, 2>, scalar_prefetch = 0 : i64, scratch_operands = 0 : i64, tpu.core_type = #tpu.core_type<tc>, window_params = [{transform_indices = @transform_0, window_bounds = array<i64: 1, 8, 32>}, {transform_indices = @transform_1, window_bounds = array<i64: 1, 1, 8>}, {transform_indices = @transform_2, window_bounds = array<i64: 1, 8, 1>}, {transform_indices = @transform_3, window_bounds = array<i64: 1, 32, 32>}, {transform_indices = @transform_4, window_bounds = array<i64: 1, 32, 32>}, {transform_indices = @transform_5, window_bounds = array<i64: 1, 32, 32>}, {transform_indices = @transform_6, window_bounds = array<i64: 1, 32, 32>}, {transform_indices = @transform_7, window_bounds = array<i64: 1, 32, 64>}, {transform_indices = @transform_8, window_bounds = array<i64: 1, 1, 64>}, {transform_indices = @transform_9, window_bounds = array<i64: 1, 64, 32>}, {transform_indices = @transform_10, window_bounds = array<i64: 1, 1, 32>}, {transform_indices = @transform_11, window_bounds = array<i64: 1, 1, 32>}, {transform_indices = @transform_12, window_bounds = array<i64: 1, 1, 32>}, {transform_indices = @transform_13, window_bounds = array<i64: 1, 1, 32>}, {transform_indices = @transform_14, window_bounds = array<i64: 1, 1, 32>}, {transform_indices = @transform_15, window_bounds = array<i64: 1, 8, 32>}]} {
    %c0_i32 = arith.constant 0 : i32
    %0 = arith.cmpi eq, %arg1, %c0_i32 : i32
    %1 = arith.extui %0 : i1 to i32
    %c0_i32_0 = arith.constant 0 : i32
    %2 = arith.cmpi ne, %1, %c0_i32_0 : i32
    scf.if %2 {
      %c0_87 = arith.constant 0 : index
      %c0_88 = arith.constant 0 : index
      %c0_89 = arith.constant 0 : index
      %206 = vector.load %arg2[%c0_87, %c0_88, %c0_89] : memref<1x8x32xf32, #tpu.memory_space<vmem>>, vector<1x8x32xf32>
      %207 = vector.shape_cast %206 : vector<1x8x32xf32> to vector<8x32xf32>
      %c0_90 = arith.constant 0 : index
      %c0_91 = arith.constant 0 : index
      %c0_92 = arith.constant 0 : index
      %208 = vector.load %arg17[%c0_90, %c0_91, %c0_92] : memref<1x8x32xf32, #tpu.memory_space<vmem>>, vector<1x8x32xf32>
      %209 = vector.shape_cast %208 : vector<1x8x32xf32> to vector<8x32xf32>
      %210 = vector.shape_cast %207 : vector<8x32xf32> to vector<1x8x32xf32>
      tpu.vector_store %arg17[%c0_90, %c0_91, %c0_92], %210 {strides = array<i32>} : memref<1x8x32xf32, #tpu.memory_space<vmem>>, vector<1x8x32xf32>,
    } else {
    }
    %c0 = arith.constant 0 : index
    %c0_1 = arith.constant 0 : index
    %c0_2 = arith.constant 0 : index
    %3 = vector.load %arg17[%c0, %c0_1, %c0_2] : memref<1x8x32xf32, #tpu.memory_space<vmem>>, vector<1x8x32xf32>
    %4 = vector.shape_cast %3 : vector<1x8x32xf32> to vector<8x32xf32>
    %5 = arith.truncf %4 : vector<8x32xf32> to vector<8x32xbf16>
    %c0_3 = arith.constant 0 : index
    %c0_4 = arith.constant 0 : index
    %c0_5 = arith.constant 0 : index
    %6 = vector.load %arg3[%c0_3, %c0_4, %c0_5] : memref<1x1x8xf32, #tpu.memory_space<vmem>>, vector<1x1x8xf32>
    %7 = vector.shape_cast %6 : vector<1x1x8xf32> to vector<1x8xf32>
    %c0_6 = arith.constant 0 : index
    %c0_7 = arith.constant 0 : index
    %c0_8 = arith.constant 0 : index
    %8 = vector.load %arg4[%c0_6, %c0_7, %c0_8] : memref<1x8x1xf32, #tpu.memory_space<vmem>>, vector<1x8x1xf32>
    %9 = vector.shape_cast %8 : vector<1x8x1xf32> to vector<8x1xf32>
    %c0_9 = arith.constant 0 : index
    %c0_10 = arith.constant 0 : index
    %c0_11 = arith.constant 0 : index
    %10 = vector.load %arg5[%c0_9, %c0_10, %c0_11] : memref<1x32x32xbf16, #tpu.memory_space<vmem>>, vector<1x32x32xbf16>
    %11 = vector.shape_cast %10 : vector<1x32x32xbf16> to vector<32x32xbf16>
    %cst = arith.constant dense<0.000000e+00> : vector<8x32xf32>
    %12 = tpu.matmul %5, %11, %cst {dimension_numbers = #tpu.dot_dimension_numbers<[1], [0], [0], [1], [0, 0, 1, 1], [], []>} : vector<8x32xbf16>, vector<32x32xbf16>, vector<8x32xf32> -> vector<8x32xf32>
    %c0_12 = arith.constant 0 : index
    %c0_13 = arith.constant 0 : index
    %c0_14 = arith.constant 0 : index
    %13 = vector.load %arg6[%c0_12, %c0_13, %c0_14] : memref<1x32x32xbf16, #tpu.memory_space<vmem>>, vector<1x32x32xbf16>
    %14 = vector.shape_cast %13 : vector<1x32x32xbf16> to vector<32x32xbf16>
    %cst_15 = arith.constant dense<0.000000e+00> : vector<8x32xf32>
    %15 = tpu.matmul %5, %14, %cst_15 {dimension_numbers = #tpu.dot_dimension_numbers<[1], [0], [0], [1], [0, 0, 1, 1], [], []>} : vector<8x32xbf16>, vector<32x32xbf16>, vector<8x32xf32> -> vector<8x32xf32>
    %c0_16 = arith.constant 0 : index
    %c0_17 = arith.constant 0 : index
    %c0_18 = arith.constant 0 : index
    %16 = vector.load %arg7[%c0_16, %c0_17, %c0_18] : memref<1x32x32xbf16, #tpu.memory_space<vmem>>, vector<1x32x32xbf16>
    %17 = vector.shape_cast %16 : vector<1x32x32xbf16> to vector<32x32xbf16>
    %cst_19 = arith.constant dense<0.000000e+00> : vector<8x32xf32>
    %18 = tpu.matmul %5, %17, %cst_19 {dimension_numbers = #tpu.dot_dimension_numbers<[1], [0], [0], [1], [0, 0, 1, 1], [], []>} : vector<8x32xbf16>, vector<32x32xbf16>, vector<8x32xf32> -> vector<8x32xf32>
    %19 = vector.extract_strided_slice %12 {offsets = [0, 0], sizes = [8, 8], strides = [1, 1]} : vector<8x32xf32> to vector<8x8xf32>
    %20 = arith.truncf %19 : vector<8x8xf32> to vector<8x8xbf16>
    %21 = vector.extract_strided_slice %15 {offsets = [0, 0], sizes = [8, 8], strides = [1, 1]} : vector<8x32xf32> to vector<8x8xf32>
    %22 = arith.truncf %21 : vector<8x8xf32> to vector<8x8xbf16>
    %23 = vector.extract_strided_slice %18 {offsets = [0, 0], sizes = [8, 8], strides = [1, 1]} : vector<8x32xf32> to vector<8x8xf32>
    %24 = arith.truncf %23 : vector<8x8xf32> to vector<8x8xbf16>
    "tpu.trace_start"() <{level = 10 : i32, message = "qd,kd->qk"}> : () -> ()
    %cst_20 = arith.constant dense<0.000000e+00> : vector<8x8xf32>
    %25 = tpu.matmul %20, %22, %cst_20 {dimension_numbers = #tpu.dot_dimension_numbers<[1], [1], [0], [0], [0, 0, 1, 0], [], []>} : vector<8x8xbf16>, vector<8x8xbf16>, vector<8x8xf32> -> vector<8x8xf32>
    "tpu.trace_stop"() : () -> ()
    %cst_21 = arith.constant 0.353553385 : f32
    %26 = vector.broadcast %cst_21 : f32 to vector<8x8xf32>
    %27 = arith.mulf %25, %26 : vector<8x8xf32>
    %28 = vector.broadcast %7 : vector<1x8xf32> to vector<8x8xf32>
    %29 = arith.addf %27, %28 : vector<8x8xf32>
    %cst_22 = arith.constant dense<0xFF800000> : vector<8xf32>
    %30 = vector.multi_reduction <maximumf>, %29, %cst_22 [1] : vector<8x8xf32> to vector<8xf32>
    %31 = vector.shape_cast %30 : vector<8xf32> to vector<8x1xf32>
    %32 = vector.broadcast %31 : vector<8x1xf32> to vector<8x8xf32>
    %33 = arith.subf %29, %32 : vector<8x8xf32>
    %34 = math.exp %33 : vector<8x8xf32>
    %cst_23 = arith.constant dense<0.000000e+00> : vector<8xf32>
    %35 = vector.multi_reduction <add>, %34, %cst_23 [1] : vector<8x8xf32> to vector<8xf32>
    %36 = vector.shape_cast %35 : vector<8xf32> to vector<8x1xf32>
    %37 = tpu.reciprocal %36 {approx = true} : vector<8x1xf32> -> vector<8x1xf32>
    %38 = vector.broadcast %37 : vector<8x1xf32> to vector<8x8xf32>
    %39 = arith.mulf %34, %38 : vector<8x8xf32>
    %40 = arith.truncf %39 : vector<8x8xf32> to vector<8x8xbf16>
    %cst_24 = arith.constant dense<0.000000e+00> : vector<8x8xf32>
    %41 = tpu.matmul %40, %24, %cst_24 {dimension_numbers = #tpu.dot_dimension_numbers<[1], [0], [0], [1], [0, 0, 1, 1], [], []>} : vector<8x8xbf16>, vector<8x8xbf16>, vector<8x8xf32> -> vector<8x8xf32>
    %42 = vector.extract_strided_slice %12 {offsets = [0, 8], sizes = [8, 8], strides = [1, 1]} : vector<8x32xf32> to vector<8x8xf32>
    %43 = arith.truncf %42 : vector<8x8xf32> to vector<8x8xbf16>
    %44 = vector.extract_strided_slice %15 {offsets = [0, 8], sizes = [8, 8], strides = [1, 1]} : vector<8x32xf32> to vector<8x8xf32>
    %45 = arith.truncf %44 : vector<8x8xf32> to vector<8x8xbf16>
    %46 = vector.extract_strided_slice %18 {offsets = [0, 8], sizes = [8, 8], strides = [1, 1]} : vector<8x32xf32> to vector<8x8xf32>
    %47 = arith.truncf %46 : vector<8x8xf32> to vector<8x8xbf16>
    "tpu.trace_start"() <{level = 10 : i32, message = "qd,kd->qk"}> : () -> ()
    %cst_25 = arith.constant dense<0.000000e+00> : vector<8x8xf32>
    %48 = tpu.matmul %43, %45, %cst_25 {dimension_numbers = #tpu.dot_dimension_numbers<[1], [1], [0], [0], [0, 0, 1, 0], [], []>} : vector<8x8xbf16>, vector<8x8xbf16>, vector<8x8xf32> -> vector<8x8xf32>
    "tpu.trace_stop"() : () -> ()
    %cst_26 = arith.constant 0.353553385 : f32
    %49 = vector.broadcast %cst_26 : f32 to vector<8x8xf32>
    %50 = arith.mulf %48, %49 : vector<8x8xf32>
    %51 = vector.broadcast %7 : vector<1x8xf32> to vector<8x8xf32>
    %52 = arith.addf %50, %51 : vector<8x8xf32>
    %cst_27 = arith.constant dense<0xFF800000> : vector<8xf32>
    %53 = vector.multi_reduction <maximumf>, %52, %cst_27 [1] : vector<8x8xf32> to vector<8xf32>
    %54 = vector.shape_cast %53 : vector<8xf32> to vector<8x1xf32>
    %55 = vector.broadcast %54 : vector<8x1xf32> to vector<8x8xf32>
    %56 = arith.subf %52, %55 : vector<8x8xf32>
    %57 = math.exp %56 : vector<8x8xf32>
    %cst_28 = arith.constant dense<0.000000e+00> : vector<8xf32>
    %58 = vector.multi_reduction <add>, %57, %cst_28 [1] : vector<8x8xf32> to vector<8xf32>
    %59 = vector.shape_cast %58 : vector<8xf32> to vector<8x1xf32>
    %60 = tpu.reciprocal %59 {approx = true} : vector<8x1xf32> -> vector<8x1xf32>
    %61 = vector.broadcast %60 : vector<8x1xf32> to vector<8x8xf32>
    %62 = arith.mulf %57, %61 : vector<8x8xf32>
    %63 = arith.truncf %62 : vector<8x8xf32> to vector<8x8xbf16>
    %cst_29 = arith.constant dense<0.000000e+00> : vector<8x8xf32>
    %64 = tpu.matmul %63, %47, %cst_29 {dimension_numbers = #tpu.dot_dimension_numbers<[1], [0], [0], [1], [0, 0, 1, 1], [], []>} : vector<8x8xbf16>, vector<8x8xbf16>, vector<8x8xf32> -> vector<8x8xf32>
    %65 = vector.extract_strided_slice %12 {offsets = [0, 16], sizes = [8, 8], strides = [1, 1]} : vector<8x32xf32> to vector<8x8xf32>
    %66 = arith.truncf %65 : vector<8x8xf32> to vector<8x8xbf16>
    %67 = vector.extract_strided_slice %15 {offsets = [0, 16], sizes = [8, 8], strides = [1, 1]} : vector<8x32xf32> to vector<8x8xf32>
    %68 = arith.truncf %67 : vector<8x8xf32> to vector<8x8xbf16>
    %69 = vector.extract_strided_slice %18 {offsets = [0, 16], sizes = [8, 8], strides = [1, 1]} : vector<8x32xf32> to vector<8x8xf32>
    %70 = arith.truncf %69 : vector<8x8xf32> to vector<8x8xbf16>
    "tpu.trace_start"() <{level = 10 : i32, message = "qd,kd->qk"}> : () -> ()
    %cst_30 = arith.constant dense<0.000000e+00> : vector<8x8xf32>
    %71 = tpu.matmul %66, %68, %cst_30 {dimension_numbers = #tpu.dot_dimension_numbers<[1], [1], [0], [0], [0, 0, 1, 0], [], []>} : vector<8x8xbf16>, vector<8x8xbf16>, vector<8x8xf32> -> vector<8x8xf32>
    "tpu.trace_stop"() : () -> ()
    %cst_31 = arith.constant 0.353553385 : f32
    %72 = vector.broadcast %cst_31 : f32 to vector<8x8xf32>
    %73 = arith.mulf %71, %72 : vector<8x8xf32>
    %74 = vector.broadcast %7 : vector<1x8xf32> to vector<8x8xf32>
    %75 = arith.addf %73, %74 : vector<8x8xf32>
    %cst_32 = arith.constant dense<0xFF800000> : vector<8xf32>
    %76 = vector.multi_reduction <maximumf>, %75, %cst_32 [1] : vector<8x8xf32> to vector<8xf32>
    %77 = vector.shape_cast %76 : vector<8xf32> to vector<8x1xf32>
    %78 = vector.broadcast %77 : vector<8x1xf32> to vector<8x8xf32>
    %79 = arith.subf %75, %78 : vector<8x8xf32>
    %80 = math.exp %79 : vector<8x8xf32>
    %cst_33 = arith.constant dense<0.000000e+00> : vector<8xf32>
    %81 = vector.multi_reduction <add>, %80, %cst_33 [1] : vector<8x8xf32> to vector<8xf32>
    %82 = vector.shape_cast %81 : vector<8xf32> to vector<8x1xf32>
    %83 = tpu.reciprocal %82 {approx = true} : vector<8x1xf32> -> vector<8x1xf32>
    %84 = vector.broadcast %83 : vector<8x1xf32> to vector<8x8xf32>
    %85 = arith.mulf %80, %84 : vector<8x8xf32>
    %86 = arith.truncf %85 : vector<8x8xf32> to vector<8x8xbf16>
    %cst_34 = arith.constant dense<0.000000e+00> : vector<8x8xf32>
    %87 = tpu.matmul %86, %70, %cst_34 {dimension_numbers = #tpu.dot_dimension_numbers<[1], [0], [0], [1], [0, 0, 1, 1], [], []>} : vector<8x8xbf16>, vector<8x8xbf16>, vector<8x8xf32> -> vector<8x8xf32>
    %88 = vector.extract_strided_slice %12 {offsets = [0, 24], sizes = [8, 8], strides = [1, 1]} : vector<8x32xf32> to vector<8x8xf32>
    %89 = arith.truncf %88 : vector<8x8xf32> to vector<8x8xbf16>
    %90 = vector.extract_strided_slice %15 {offsets = [0, 24], sizes = [8, 8], strides = [1, 1]} : vector<8x32xf32> to vector<8x8xf32>
    %91 = arith.truncf %90 : vector<8x8xf32> to vector<8x8xbf16>
    %92 = vector.extract_strided_slice %18 {offsets = [0, 24], sizes = [8, 8], strides = [1, 1]} : vector<8x32xf32> to vector<8x8xf32>
    %93 = arith.truncf %92 : vector<8x8xf32> to vector<8x8xbf16>
    "tpu.trace_start"() <{level = 10 : i32, message = "qd,kd->qk"}> : () -> ()
    %cst_35 = arith.constant dense<0.000000e+00> : vector<8x8xf32>
    %94 = tpu.matmul %89, %91, %cst_35 {dimension_numbers = #tpu.dot_dimension_numbers<[1], [1], [0], [0], [0, 0, 1, 0], [], []>} : vector<8x8xbf16>, vector<8x8xbf16>, vector<8x8xf32> -> vector<8x8xf32>
    "tpu.trace_stop"() : () -> ()
    %cst_36 = arith.constant 0.353553385 : f32
    %95 = vector.broadcast %cst_36 : f32 to vector<8x8xf32>
    %96 = arith.mulf %94, %95 : vector<8x8xf32>
    %97 = vector.broadcast %7 : vector<1x8xf32> to vector<8x8xf32>
    %98 = arith.addf %96, %97 : vector<8x8xf32>
    %cst_37 = arith.constant dense<0xFF800000> : vector<8xf32>
    %99 = vector.multi_reduction <maximumf>, %98, %cst_37 [1] : vector<8x8xf32> to vector<8xf32>
    %100 = vector.shape_cast %99 : vector<8xf32> to vector<8x1xf32>
    %101 = vector.broadcast %100 : vector<8x1xf32> to vector<8x8xf32>
    %102 = arith.subf %98, %101 : vector<8x8xf32>
    %103 = math.exp %102 : vector<8x8xf32>
    %cst_38 = arith.constant dense<0.000000e+00> : vector<8xf32>
    %104 = vector.multi_reduction <add>, %103, %cst_38 [1] : vector<8x8xf32> to vector<8xf32>
    %105 = vector.shape_cast %104 : vector<8xf32> to vector<8x1xf32>
    %106 = tpu.reciprocal %105 {approx = true} : vector<8x1xf32> -> vector<8x1xf32>
    %107 = vector.broadcast %106 : vector<8x1xf32> to vector<8x8xf32>
    %108 = arith.mulf %103, %107 : vector<8x8xf32>
    %109 = arith.truncf %108 : vector<8x8xf32> to vector<8x8xbf16>
    %cst_39 = arith.constant dense<0.000000e+00> : vector<8x8xf32>
    %110 = tpu.matmul %109, %93, %cst_39 {dimension_numbers = #tpu.dot_dimension_numbers<[1], [0], [0], [1], [0, 0, 1, 1], [], []>} : vector<8x8xbf16>, vector<8x8xbf16>, vector<8x8xf32> -> vector<8x8xf32>
    %111 = tpu.concatenate %41, %64, %87, %110 in 1 : vector<8x8xf32>, vector<8x8xf32>, vector<8x8xf32>, vector<8x8xf32> -> vector<8x32xf32>
    %112 = vector.broadcast %9 : vector<8x1xf32> to vector<8x32xf32>
    %113 = arith.mulf %111, %112 : vector<8x32xf32>
    %114 = arith.truncf %113 : vector<8x32xf32> to vector<8x32xbf16>
    %c0_40 = arith.constant 0 : index
    %c0_41 = arith.constant 0 : index
    %c0_42 = arith.constant 0 : index
    %115 = vector.load %arg8[%c0_40, %c0_41, %c0_42] : memref<1x32x32xbf16, #tpu.memory_space<vmem>>, vector<1x32x32xbf16>
    %116 = vector.shape_cast %115 : vector<1x32x32xbf16> to vector<32x32xbf16>
    %cst_43 = arith.constant dense<0.000000e+00> : vector<8x32xf32>
    %117 = tpu.matmul %114, %116, %cst_43 {dimension_numbers = #tpu.dot_dimension_numbers<[1], [0], [0], [1], [0, 0, 1, 1], [], []>} : vector<8x32xbf16>, vector<32x32xbf16>, vector<8x32xf32> -> vector<8x32xf32>
    %118 = arith.addf %117, %4 : vector<8x32xf32>
    %c0_44 = arith.constant 0 : index
    %c0_45 = arith.constant 0 : index
    %c0_46 = arith.constant 0 : index
    %119 = vector.load %arg13[%c0_44, %c0_45, %c0_46] : memref<1x1x32xf32, #tpu.memory_space<vmem>>, vector<1x1x32xf32>
    %120 = vector.shape_cast %119 : vector<1x1x32xf32> to vector<1x32xf32>
    %c0_47 = arith.constant 0 : index
    %c0_48 = arith.constant 0 : index
    %c0_49 = arith.constant 0 : index
    %121 = vector.load %arg14[%c0_47, %c0_48, %c0_49] : memref<1x1x32xf32, #tpu.memory_space<vmem>>, vector<1x1x32xf32>
    %122 = vector.shape_cast %121 : vector<1x1x32xf32> to vector<1x32xf32>
    %cst_50 = arith.constant dense<0.000000e+00> : vector<8xf32>
    %123 = vector.multi_reduction <add>, %118, %cst_50 [1] : vector<8x32xf32> to vector<8xf32>
    %124 = vector.shape_cast %123 : vector<8xf32> to vector<8x1xf32>
    %cst_51 = arith.constant 3.200000e+01 : f32
    %125 = vector.broadcast %cst_51 : f32 to vector<8x1xf32>
    %126 = arith.divf %124, %125 : vector<8x1xf32>
    %127 = vector.broadcast %126 : vector<8x1xf32> to vector<8x32xf32>
    %128 = arith.subf %118, %127 : vector<8x32xf32>
    %129 = arith.mulf %128, %128 : vector<8x32xf32>
    %cst_52 = arith.constant dense<0.000000e+00> : vector<8xf32>
    %130 = vector.multi_reduction <add>, %129, %cst_52 [1] : vector<8x32xf32> to vector<8xf32>
    %131 = vector.shape_cast %130 : vector<8xf32> to vector<8x1xf32>
    %cst_53 = arith.constant 3.200000e+01 : f32
    %132 = vector.broadcast %cst_53 : f32 to vector<8x1xf32>
    %133 = arith.divf %131, %132 : vector<8x1xf32>
    %134 = vector.broadcast %126 : vector<8x1xf32> to vector<8x32xf32>
    %135 = arith.subf %118, %134 : vector<8x32xf32>
    %cst_54 = arith.constant 9.99999974E-6 : f32
    %136 = vector.broadcast %cst_54 : f32 to vector<8x1xf32>
    %137 = arith.addf %133, %136 : vector<8x1xf32>
    %138 = math.rsqrt %137 : vector<8x1xf32>
    %139 = vector.broadcast %138 : vector<8x1xf32> to vector<8x32xf32>
    %140 = arith.mulf %135, %139 : vector<8x32xf32>
    %141 = vector.broadcast %120 : vector<1x32xf32> to vector<8x32xf32>
    %142 = arith.mulf %140, %141 : vector<8x32xf32>
    %143 = vector.broadcast %122 : vector<1x32xf32> to vector<8x32xf32>
    %144 = arith.addf %142, %143 : vector<8x32xf32>
    %145 = arith.truncf %144 : vector<8x32xf32> to vector<8x32xbf16>
    %c0_55 = arith.constant 0 : index
    %c0_56 = arith.constant 0 : index
    %c0_57 = arith.constant 0 : index
    %146 = vector.load %arg9[%c0_55, %c0_56, %c0_57] : memref<1x32x64xbf16, #tpu.memory_space<vmem>>, vector<1x32x64xbf16>
    %147 = vector.shape_cast %146 : vector<1x32x64xbf16> to vector<32x64xbf16>
    %cst_58 = arith.constant dense<0.000000e+00> : vector<8x64xf32>
    %148 = tpu.matmul %145, %147, %cst_58 {dimension_numbers = #tpu.dot_dimension_numbers<[1], [0], [0], [1], [0, 0, 1, 1], [], []>} : vector<8x32xbf16>, vector<32x64xbf16>, vector<8x64xf32> -> vector<8x64xf32>
    %c0_59 = arith.constant 0 : index
    %c0_60 = arith.constant 0 : index
    %c0_61 = arith.constant 0 : index
    %149 = vector.load %arg10[%c0_59, %c0_60, %c0_61] : memref<1x1x64xf32, #tpu.memory_space<vmem>>, vector<1x1x64xf32>
    %150 = vector.shape_cast %149 : vector<1x1x64xf32> to vector<1x64xf32>
    %151 = vector.broadcast %150 : vector<1x64xf32> to vector<8x64xf32>
    %152 = arith.addf %148, %151 : vector<8x64xf32>
    %cst_62 = arith.constant 5.000000e-01 : f32
    %153 = vector.broadcast %cst_62 : f32 to vector<8x64xf32>
    %154 = arith.mulf %153, %152 : vector<8x64xf32>
    %cst_63 = arith.constant 4.471500e-02 : f32
    %155 = vector.broadcast %cst_63 : f32 to vector<8x64xf32>
    %156 = arith.mulf %155, %152 : vector<8x64xf32>
    %157 = arith.mulf %156, %152 : vector<8x64xf32>
    %158 = arith.mulf %157, %152 : vector<8x64xf32>
    %159 = arith.addf %152, %158 : vector<8x64xf32>
    %cst_64 = arith.constant 0.797884583 : f32
    %160 = vector.broadcast %cst_64 : f32 to vector<8x64xf32>
    %161 = arith.mulf %160, %159 : vector<8x64xf32>
    %162 = math.tanh %161 : vector<8x64xf32>
    %cst_65 = arith.constant 1.000000e+00 : f32
    %163 = vector.broadcast %cst_65 : f32 to vector<8x64xf32>
    %164 = arith.addf %163, %162 : vector<8x64xf32>
    %165 = arith.mulf %154, %164 : vector<8x64xf32>
    %166 = arith.truncf %165 : vector<8x64xf32> to vector<8x64xbf16>
    %c0_66 = arith.constant 0 : index
    %c0_67 = arith.constant 0 : index
    %c0_68 = arith.constant 0 : index
    %167 = vector.load %arg11[%c0_66, %c0_67, %c0_68] : memref<1x64x32xbf16, #tpu.memory_space<vmem>>, vector<1x64x32xbf16>
    %168 = vector.shape_cast %167 : vector<1x64x32xbf16> to vector<64x32xbf16>
    %cst_69 = arith.constant dense<0.000000e+00> : vector<8x32xf32>
    %169 = tpu.matmul %166, %168, %cst_69 {dimension_numbers = #tpu.dot_dimension_numbers<[1], [0], [0], [1], [0, 0, 1, 1], [], []>} : vector<8x64xbf16>, vector<64x32xbf16>, vector<8x32xf32> -> vector<8x32xf32>
    %c0_70 = arith.constant 0 : index
    %c0_71 = arith.constant 0 : index
    %c0_72 = arith.constant 0 : index
    %170 = vector.load %arg12[%c0_70, %c0_71, %c0_72] : memref<1x1x32xf32, #tpu.memory_space<vmem>>, vector<1x1x32xf32>
    %171 = vector.shape_cast %170 : vector<1x1x32xf32> to vector<1x32xf32>
    %172 = vector.broadcast %171 : vector<1x32xf32> to vector<8x32xf32>
    %173 = arith.addf %169, %172 : vector<8x32xf32>
    %174 = arith.addf %173, %144 : vector<8x32xf32>
    %c0_73 = arith.constant 0 : index
    %c0_74 = arith.constant 0 : index
    %c0_75 = arith.constant 0 : index
    %175 = vector.load %arg15[%c0_73, %c0_74, %c0_75] : memref<1x1x32xf32, #tpu.memory_space<vmem>>, vector<1x1x32xf32>
    %176 = vector.shape_cast %175 : vector<1x1x32xf32> to vector<1x32xf32>
    %c0_76 = arith.constant 0 : index
    %c0_77 = arith.constant 0 : index
    %c0_78 = arith.constant 0 : index
    %177 = vector.load %arg16[%c0_76, %c0_77, %c0_78] : memref<1x1x32xf32, #tpu.memory_space<vmem>>, vector<1x1x32xf32>
    %178 = vector.shape_cast %177 : vector<1x1x32xf32> to vector<1x32xf32>
    %cst_79 = arith.constant dense<0.000000e+00> : vector<8xf32>
    %179 = vector.multi_reduction <add>, %174, %cst_79 [1] : vector<8x32xf32> to vector<8xf32>
    %180 = vector.shape_cast %179 : vector<8xf32> to vector<8x1xf32>
    %cst_80 = arith.constant 3.200000e+01 : f32
    %181 = vector.broadcast %cst_80 : f32 to vector<8x1xf32>
    %182 = arith.divf %180, %181 : vector<8x1xf32>
    %183 = vector.broadcast %182 : vector<8x1xf32> to vector<8x32xf32>
    %184 = arith.subf %174, %183 : vector<8x32xf32>
    %185 = arith.mulf %184, %184 : vector<8x32xf32>
    %cst_81 = arith.constant dense<0.000000e+00> : vector<8xf32>
    %186 = vector.multi_reduction <add>, %185, %cst_81 [1] : vector<8x32xf32> to vector<8xf32>
    %187 = vector.shape_cast %186 : vector<8xf32> to vector<8x1xf32>
    %cst_82 = arith.constant 3.200000e+01 : f32
    %188 = vector.broadcast %cst_82 : f32 to vector<8x1xf32>
    %189 = arith.divf %187, %188 : vector<8x1xf32>
    %190 = vector.broadcast %182 : vector<8x1xf32> to vector<8x32xf32>
    %191 = arith.subf %174, %190 : vector<8x32xf32>
    %cst_83 = arith.constant 9.99999974E-6 : f32
    %192 = vector.broadcast %cst_83 : f32 to vector<8x1xf32>
    %193 = arith.addf %189, %192 : vector<8x1xf32>
    %194 = math.rsqrt %193 : vector<8x1xf32>
    %195 = vector.broadcast %194 : vector<8x1xf32> to vector<8x32xf32>
    %196 = arith.mulf %191, %195 : vector<8x32xf32>
    %197 = vector.broadcast %176 : vector<1x32xf32> to vector<8x32xf32>
    %198 = arith.mulf %196, %197 : vector<8x32xf32>
    %199 = vector.broadcast %178 : vector<1x32xf32> to vector<8x32xf32>
    %200 = arith.addf %198, %199 : vector<8x32xf32>
    %201 = vector.broadcast %9 : vector<8x1xf32> to vector<8x32xf32>
    %202 = arith.mulf %200, %201 : vector<8x32xf32>
    %c0_84 = arith.constant 0 : index
    %c0_85 = arith.constant 0 : index
    %c0_86 = arith.constant 0 : index
    %203 = vector.load %arg17[%c0_84, %c0_85, %c0_86] : memref<1x8x32xf32, #tpu.memory_space<vmem>>, vector<1x8x32xf32>
    %204 = vector.shape_cast %203 : vector<1x8x32xf32> to vector<8x32xf32>
    %205 = vector.shape_cast %202 : vector<8x32xf32> to vector<1x8x32xf32>
    tpu.vector_store %arg17[%c0_84, %c0_85, %c0_86], %205 {strides = array<i32>} : memref<1x8x32xf32, #tpu.memory_space<vmem>>, vector<1x8x32xf32>,
    return
  }
  func.func @transform_0(%arg0: i32, %arg1: i32) -> (i32, i32, i32) {
    %c0_i32 = arith.constant 0 : i32
    %c0_i32_0 = arith.constant 0 : i32
    %c0_i32_1 = arith.constant 0 : i32
    return %arg0, %c0_i32, %c0_i32_0 : i32, i32, i32
  }
  func.func @transform_1(%arg0: i32, %arg1: i32) -> (i32, i32, i32) {
    %c0_i32 = arith.constant 0 : i32
    %c0_i32_0 = arith.constant 0 : i32
    %c0_i32_1 = arith.constant 0 : i32
    return %arg0, %c0_i32, %c0_i32_0 : i32, i32, i32
  }
  func.func @transform_2(%arg0: i32, %arg1: i32) -> (i32, i32, i32) {
    %c0_i32 = arith.constant 0 : i32
    %c0_i32_0 = arith.constant 0 : i32
    %c0_i32_1 = arith.constant 0 : i32
    return %arg0, %c0_i32, %c0_i32_0 : i32, i32, i32
  }
  func.func @transform_3(%arg0: i32, %arg1: i32) -> (i32, i32, i32) {
    %c0_i32 = arith.constant 0 : i32
    %c0_i32_0 = arith.constant 0 : i32
    %c0_i32_1 = arith.constant 0 : i32
    return %arg1, %c0_i32, %c0_i32_0 : i32, i32, i32
  }
  func.func @transform_4(%arg0: i32, %arg1: i32) -> (i32, i32, i32) {
    %c0_i32 = arith.constant 0 : i32
    %c0_i32_0 = arith.constant 0 : i32
    %c0_i32_1 = arith.constant 0 : i32
    return %arg1, %c0_i32, %c0_i32_0 : i32, i32, i32
  }
  func.func @transform_5(%arg0: i32, %arg1: i32) -> (i32, i32, i32) {
    %c0_i32 = arith.constant 0 : i32
    %c0_i32_0 = arith.constant 0 : i32
    %c0_i32_1 = arith.constant 0 : i32
    return %arg1, %c0_i32, %c0_i32_0 : i32, i32, i32
  }
  func.func @transform_6(%arg0: i32, %arg1: i32) -> (i32, i32, i32) {
    %c0_i32 = arith.constant 0 : i32
    %c0_i32_0 = arith.constant 0 : i32
    %c0_i32_1 = arith.constant 0 : i32
    return %arg1, %c0_i32, %c0_i32_0 : i32, i32, i32
  }
  func.func @transform_7(%arg0: i32, %arg1: i32) -> (i32, i32, i32) {
    %c0_i32 = arith.constant 0 : i32
    %c0_i32_0 = arith.constant 0 : i32
    %c0_i32_1 = arith.constant 0 : i32
    return %arg1, %c0_i32, %c0_i32_0 : i32, i32, i32
  }
  func.func @transform_8(%arg0: i32, %arg1: i32) -> (i32, i32, i32) {
    %c0_i32 = arith.constant 0 : i32
    %c0_i32_0 = arith.constant 0 : i32
    %c0_i32_1 = arith.constant 0 : i32
    return %arg1, %c0_i32, %c0_i32_0 : i32, i32, i32
  }
  func.func @transform_9(%arg0: i32, %arg1: i32) -> (i32, i32, i32) {
    %c0_i32 = arith.constant 0 : i32
    %c0_i32_0 = arith.constant 0 : i32
    %c0_i32_1 = arith.constant 0 : i32
    return %arg1, %c0_i32, %c0_i32_0 : i32, i32, i32
  }
  func.func @transform_10(%arg0: i32, %arg1: i32) -> (i32, i32, i32) {
    %c0_i32 = arith.constant 0 : i32
    %c0_i32_0 = arith.constant 0 : i32
    %c0_i32_1 = arith.constant 0 : i32
    return %arg1, %c0_i32, %c0_i32_0 : i32, i32, i32
  }
  func.func @transform_11(%arg0: i32, %arg1: i32) -> (i32, i32, i32) {
    %c0_i32 = arith.constant 0 : i32
    %c0_i32_0 = arith.constant 0 : i32
    %c0_i32_1 = arith.constant 0 : i32
    return %arg1, %c0_i32, %c0_i32_0 : i32, i32, i32
  }
  func.func @transform_12(%arg0: i32, %arg1: i32) -> (i32, i32, i32) {
    %c0_i32 = arith.constant 0 : i32
    %c0_i32_0 = arith.constant 0 : i32
    %c0_i32_1 = arith.constant 0 : i32
    return %arg1, %c0_i32, %c0_i32_0 : i32, i32, i32
  }
  func.func @transform_13(%arg0: i32, %arg1: i32) -> (i32, i32, i32) {
    %c0_i32 = arith.constant 0 : i32
    %c0_i32_0 = arith.constant 0 : i32
    %c0_i32_1 = arith.constant 0 : i32
    return %arg1, %c0_i32, %c0_i32_0 : i32, i32, i32
  }
  func.func @transform_14(%arg0: i32, %arg1: i32) -> (i32, i32, i32) {
    %c0_i32 = arith.constant 0 : i32
    %c0_i32_0 = arith.constant 0 : i32
    %c0_i32_1 = arith.constant 0 : i32
    return %arg1, %c0_i32, %c0_i32_0 : i32, i32, i32
  }
  func.func @transform_15(%arg0: i32, %arg1: i32) -> (i32, i32, i32) {
    %c0_i32 = arith.constant 0 : i32
    %c0_i32_0 = arith.constant 0 : i32
    %c0_i32_1 = arith.constant 0 : i32
    return %arg0, %c0_i32, %c0_i32_0 : i32, i32, i32
  }
}

</mosaic_0001>

<llo_original>
// kernel: tpu_custom_call.1
$region0: #{tpu_custom_call.1}
  #allocation0 [shape = 'u32[]', space=smem, size = 0x4, offset = 0x4, fixed_abs, tag = 'smem constant byte address 0x4 - core index']
  #allocation1 [shape = 'u32[144,128]{1,0:T(1,128)}', space=vmem, size = 0x12000, scoped, tag = 'internal scratch']
  %s0 = inlined_call_operand.vmem [shape: f32[2,8,32], index: 0, kind: input, shape index: {}]
  %s1 = inlined_call_operand.vmem [shape: f32[2,1,8], index: 1, kind: input, shape index: {}]
  %s2 = inlined_call_operand.vmem [shape: f32[2,8,1], index: 2, kind: input, shape index: {}]
  %s3 = inlined_call_operand.vmem [shape: bf16[2,32,32], index: 3, kind: input, shape index: {}]
  %s4 = inlined_call_operand.vmem [shape: bf16[2,32,32], index: 4, kind: input, shape index: {}]
  %s5 = inlined_call_operand.vmem [shape: bf16[2,32,32], index: 5, kind: input, shape index: {}]
  %s6 = inlined_call_operand.hbm [shape: bf16[2,32,32], index: 6, kind: input, shape index: {}]
  %s7 = inlined_call_operand.hbm [shape: bf16[2,32,64], index: 7, kind: input, shape index: {}]
  %s8 = inlined_call_operand.vmem [shape: f32[2,1,64], index: 8, kind: input, shape index: {}]
  %s9 = inlined_call_operand.vmem [shape: bf16[2,64,32], index: 9, kind: input, shape index: {}]
  %s10 = inlined_call_operand.vmem [shape: f32[2,1,32], index: 10, kind: input, shape index: {}]
  %s11 = inlined_call_operand.vmem [shape: f32[2,1,32], index: 11, kind: input, shape index: {}]
  %s12 = inlined_call_operand.vmem [shape: f32[2,1,32], index: 12, kind: input, shape index: {}]
  %s13 = inlined_call_operand.vmem [shape: f32[2,1,32], index: 13, kind: input, shape index: {}]
  %s14 = inlined_call_operand.vmem [shape: f32[2,1,32], index: 14, kind: input, shape index: {}]
  %s15 = inlined_call_operand.hbm [shape: f32[2,8,32], index: 15, kind: output, shape index: {}]
  %s16 = sld [smem:[#allocation0]]
  $region105: #{tpu_custom_call.1} parent=0
    _
  %s18 = ssub.s32 1, %s16
  %s19 = scalar_select 0, %s18, %s16
  $region1: #{tpu_custom_call.1} parent=0
    #allocation2 [shape = 'u8[16384]{0}', space=vmem, size = 0x4000, scoped, tag = 'input window, operand 6']
    #allocation3 [shape = 's32[2]{0}', space=sflag, size = 0x8, scoped, tag = 'scoped memory for tpu_custom_call.1']
    #allocation4 [shape = 's32[2]{0}', space=sflag, size = 0x8, scoped, tag = 'scoped memory for tpu_custom_call.1']
    #allocation5 [shape = 'u8[16384]{0}', space=vmem, size = 0x4000, scoped, tag = 'input window, operand 7']
    #allocation6 [shape = 's32[2]{0}', space=sflag, size = 0x8, scoped, tag = 'scoped memory for tpu_custom_call.1']
    #allocation7 [shape = 'u8[8192]{0}', space=vmem, size = 0x2000, scoped, tag = 'output window, operand 0']
    %20 = vsyncpa [#allocation3], 0
    %s21 = scalar_lea.sflag [#allocation3], 1
    %22 = vsyncpa %s21, 0
    %23 = vsyncpa [#allocation6], 0
    %s24 = scalar_lea.sflag [#allocation6], 1
    %25 = vsyncpa %s24, 0
    %26 = vsyncpa [#allocation4], 0
    %s27 = scalar_lea.sflag [#allocation4], 1
    %28 = vsyncpa %s27, 0
    loop: start=0, step=1, limit=6
    $region2: #{tpu_custom_call.1} parent=1 // loop_pre_header
      _
    $region3: #{tpu_custom_call.1} parent=1 // loop_header
      %s30 = sphi 0, %s34
      %p31 = scmp.ge.s32.totalorder %s30, 6
      %s37 = sphi 0, %s49
      %s38 = sphi 0, %s45
      %s39 = sphi 0, %s37
      %s40 = sphi 0, %s38
      %s41 = sphi 0, %s39
      %s42 = sphi 0, %s40
      %s52 = sphi 0, %s54
      %s55 = sphi 0, %s52
      %s56 = sphi 0, %s55
      %s72 = sphi 0, %s56
      %s78 = sphi 0, %s80
      %s81 = sphi 0, %s78
      %s82 = sphi 0, %s81
      %s98 = sphi 0, %s82
      %s104 = sphi 0, %s106
      %s107 = sphi 0, %s104
      %s108 = sphi 0, %s107
      %s124 = sphi 0, %s108
      %s130 = sphi 0, %s132
      %s133 = sphi 0, %s130
      %s134 = sphi 0, %s133
      %s150 = sphi 0, %s134
      %s156 = sphi 0, %s158
      %s159 = sphi 0, %s156
      %s160 = sphi 0, %s159
      %s176 = sphi 0, %s160
      %s182 = sphi 0, %s184
      %s185 = sphi 0, %s182
      %s186 = sphi 0, %s185
      %s202 = sphi 0, %s186
      %s208 = sphi 0, %s210
      %s211 = sphi 0, %s208
      %s212 = sphi 0, %s211
      %s228 = sphi 0, %s212
      %s234 = sphi 0, %s236
      %s237 = sphi 0, %s234
      %s238 = sphi 0, %s237
      %s254 = sphi 0, %s238
      %s260 = sphi 0, %s262
      %s263 = sphi 0, %s260
      %s264 = sphi 0, %s263
      %s280 = sphi 0, %s264
      %s286 = sphi 0, %s288
      %s289 = sphi 0, %s286
      %s290 = sphi 0, %s289
      %s306 = sphi 0, %s290
      %s312 = sphi 0, %s314
      %s315 = sphi 0, %s312
      %s316 = sphi 0, %s315
      %s332 = sphi 0, %s316
      %s338 = sphi 0, %s340
      %s341 = sphi 0, %s338
      %s342 = sphi 0, %s341
      %s358 = sphi 0, %s342
      %s364 = sphi 0, %s366
      %s367 = sphi 0, %s364
      %s368 = sphi 0, %s367
      %s384 = sphi 0, %s368
      %s390 = sphi 0, %s392
      %s393 = sphi 0, %s390
      %s394 = sphi 0, %s393
      %s410 = sphi 0, %s394
      %s416 = sphi 0, %s418
      %s419 = sphi 0, %s416
      %s420 = sphi 0, %s419
      %s436 = sphi 0, %s420
      %s442 = sphi 0, %s444
      %s445 = sphi 0, %s442
      %s446 = sphi 0, %s445
      %s462 = sphi 0, %s446
    $region4: #{tpu_custom_call.1} parent=1 // loop_header_branch
      %33 = sbr.rel (%p31) target = $region8
    $region5: #{tpu_custom_call.1} parent=1 // loop_body
      %s35 = ssub.s32 %s30, 1
      %s36 = ssub.s32 %s30, 2
      %s43 = sadd.s32 1, %s38
      %p44 = scmp.ge.s32.totalorder %s43, 2
      %s45 = scalar_select %p44, 0, %s43
      %s46 = sadd.s32 1, %s37
      %s47 = scalar_select %p44, %s46, %s37
      %p48 = scmp.ge.s32.totalorder %s47, 2
      %s49 = scalar_select %p48, 0, %s47
      %s50 = ssub.s32 %s37, %s49
      %p51 = scmp.eq.s32.totalorder %s50, 0
      %s53 = sadd.s32 %s52, 1
      %s54 = scalar_select %p51, %s52, %s53
      %p57 = pneg %p51
      %p58 = scmp.eq.s32.totalorder %s30, 3
      %p59 = por %p57, %p58
      %p60 = scmp.ne.s32.totalorder %s52, %s55
      %p61 = scmp.eq.s32.totalorder %s30, 0
      %p62 = por %p60, %p61
      %p63 = scmp.ne.s32.totalorder %s52, %s55
      %p64 = scmp.eq.s32.totalorder %s35, 3
      %p65 = por %p63, %p64
      %p66 = scmp.ne.s32.totalorder %s55, %s56
      %p67 = scmp.eq.s32.totalorder %s35, 0
      %p68 = por %p66, %p67
      %p69 = scmp.ne.s32.totalorder %s55, %s56
      %p70 = scmp.eq.s32.totalorder %s36, 3
      %p71 = por %p69, %p70
      %p73 = scmp.ne.s32.totalorder %s56, %s72
      %p74 = scmp.eq.s32.totalorder %s36, 0
      %p75 = por %p73, %p74
      %s76 = ssub.s32 %s37, %s49
      %p77 = scmp.eq.s32.totalorder %s76, 0
      %s79 = sadd.s32 %s78, 1
      %s80 = scalar_select %p77, %s78, %s79
      %p83 = pneg %p77
      %p84 = scmp.eq.s32.totalorder %s30, 3
      %p85 = por %p83, %p84
      %p86 = scmp.ne.s32.totalorder %s78, %s81
      %p87 = scmp.eq.s32.totalorder %s30, 0
      %p88 = por %p86, %p87
      %p89 = scmp.ne.s32.totalorder %s78, %s81
      %p90 = scmp.eq.s32.totalorder %s35, 3
      %p91 = por %p89, %p90
      %p92 = scmp.ne.s32.totalorder %s81, %s82
      %p93 = scmp.eq.s32.totalorder %s35, 0
      %p94 = por %p92, %p93
      %p95 = scmp.ne.s32.totalorder %s81, %s82
      %p96 = scmp.eq.s32.totalorder %s36, 3
      %p97 = por %p95, %p96
      %p99 = scmp.ne.s32.totalorder %s82, %s98
      %p100 = scmp.eq.s32.totalorder %s36, 0
      %p101 = por %p99, %p100
      %s102 = ssub.s32 %s37, %s49
      %p103 = scmp.eq.s32.totalorder %s102, 0
      %s105 = sadd.s32 %s104, 1
      %s106 = scalar_select %p103, %s104, %s105
      %p109 = pneg %p103
      %p110 = scmp.eq.s32.totalorder %s30, 3
      %p111 = por %p109, %p110
      %p112 = scmp.ne.s32.totalorder %s104, %s107
      %p113 = scmp.eq.s32.totalorder %s30, 0
      %p114 = por %p112, %p113
      %p115 = scmp.ne.s32.totalorder %s104, %s107
      %p116 = scmp.eq.s32.totalorder %s35, 3
      %p117 = por %p115, %p116
      %p118 = scmp.ne.s32.totalorder %s107, %s108
      %p119 = scmp.eq.s32.totalorder %s35, 0
      %p120 = por %p118, %p119
      %p121 = scmp.ne.s32.totalorder %s107, %s108
      %p122 = scmp.eq.s32.totalorder %s36, 3
      %p123 = por %p121, %p122
      %p125 = scmp.ne.s32.totalorder %s108, %s124
      %p126 = scmp.eq.s32.totalorder %s36, 0
      %p127 = por %p125, %p126
      %s128 = ssub.s32 %s38, %s45
      %p129 = scmp.eq.s32.totalorder %s128, 0
      %s131 = sadd.s32 %s130, 1
      %s132 = scalar_select %p129, %s130, %s131
      %p135 = pneg %p129
      %p136 = scmp.eq.s32.totalorder %s30, 3
      %p137 = por %p135, %p136
      %p138 = scmp.ne.s32.totalorder %s130, %s133
      %p139 = scmp.eq.s32.totalorder %s30, 0
      %p140 = por %p138, %p139
      %p141 = scmp.ne.s32.totalorder %s130, %s133
      %p142 = scmp.eq.s32.totalorder %s35, 3
      %p143 = por %p141, %p142
      %p144 = scmp.ne.s32.totalorder %s133, %s134
      %p145 = scmp.eq.s32.totalorder %s35, 0
      %p146 = por %p144, %p145
      %p147 = scmp.ne.s32.totalorder %s133, %s134
      %p148 = scmp.eq.s32.totalorder %s36, 3
      %p149 = por %p147, %p148
      %p151 = scmp.ne.s32.totalorder %s134, %s150
      %p152 = scmp.eq.s32.totalorder %s36, 0
      %p153 = por %p151, %p152
      %s154 = ssub.s32 %s38, %s45
      %p155 = scmp.eq.s32.totalorder %s154, 0
      %s157 = sadd.s32 %s156, 1
      %s158 = scalar_select %p155, %s156, %s157
      %p161 = pneg %p155
      %p162 = scmp.eq.s32.totalorder %s30, 3
      %p163 = por %p161, %p162
      %p164 = scmp.ne.s32.totalorder %s156, %s159
      %p165 = scmp.eq.s32.totalorder %s30, 0
      %p166 = por %p164, %p165
      %p167 = scmp.ne.s32.totalorder %s156, %s159
      %p168 = scmp.eq.s32.totalorder %s35, 3
      %p169 = por %p167, %p168
      %p170 = scmp.ne.s32.totalorder %s159, %s160
      %p171 = scmp.eq.s32.totalorder %s35, 0
      %p172 = por %p170, %p171
      %p173 = scmp.ne.s32.totalorder %s159, %s160
      %p174 = scmp.eq.s32.totalorder %s36, 3
      %p175 = por %p173, %p174
      %p177 = scmp.ne.s32.totalorder %s160, %s176
      %p178 = scmp.eq.s32.totalorder %s36, 0
      %p179 = por %p177, %p178
      %s180 = ssub.s32 %s38, %s45
      %p181 = scmp.eq.s32.totalorder %s180, 0
      %s183 = sadd.s32 %s182, 1
      %s184 = scalar_select %p181, %s182, %s183
      %p187 = pneg %p181
      %p188 = scmp.eq.s32.totalorder %s30, 3
      %p189 = por %p187, %p188
      %p190 = scmp.ne.s32.totalorder %s182, %s185
      %p191 = scmp.eq.s32.totalorder %s30, 0
      %p192 = por %p190, %p191
      %p193 = scmp.ne.s32.totalorder %s182, %s185
      %p194 = scmp.eq.s32.totalorder %s35, 3
      %p195 = por %p193, %p194
      %p196 = scmp.ne.s32.totalorder %s185, %s186
      %p197 = scmp.eq.s32.totalorder %s35, 0
      %p198 = por %p196, %p197
      %p199 = scmp.ne.s32.totalorder %s185, %s186
      %p200 = scmp.eq.s32.totalorder %s36, 3
      %p201 = por %p199, %p200
      %p203 = scmp.ne.s32.totalorder %s186, %s202
      %p204 = scmp.eq.s32.totalorder %s36, 0
      %p205 = por %p203, %p204
      %s206 = ssub.s32 %s38, %s45
      %p207 = scmp.eq.s32.totalorder %s206, 0
      %s209 = sadd.s32 %s208, 1
      %s210 = scalar_select %p207, %s208, %s209
      %p213 = pneg %p207
      %p214 = scmp.eq.s32.totalorder %s30, 3
      %p215 = por %p213, %p214
      %p216 = scmp.ne.s32.totalorder %s208, %s211
      %p217 = scmp.eq.s32.totalorder %s30, 0
      %p218 = por %p216, %p217
      %p219 = scmp.ne.s32.totalorder %s208, %s211
      %p220 = scmp.eq.s32.totalorder %s35, 3
      %p221 = por %p219, %p220
      %p222 = scmp.ne.s32.totalorder %s211, %s212
      %p223 = scmp.eq.s32.totalorder %s35, 0
      %p224 = por %p222, %p223
      %p225 = scmp.ne.s32.totalorder %s211, %s212
      %p226 = scmp.eq.s32.totalorder %s36, 3
      %p227 = por %p225, %p226
      %p229 = scmp.ne.s32.totalorder %s212, %s228
      %p230 = scmp.eq.s32.totalorder %s36, 0
      %p231 = por %p229, %p230
      %s232 = ssub.s32 %s38, %s45
      %p233 = scmp.eq.s32.totalorder %s232, 0
      %s235 = sadd.s32 %s234, 1
      %s236 = scalar_select %p233, %s234, %s235
      %p239 = pneg %p233
      %p240 = scmp.eq.s32.totalorder %s30, 3
      %p241 = por %p239, %p240
      %p242 = scmp.ne.s32.totalorder %s234, %s237
      %p243 = scmp.eq.s32.totalorder %s30, 0
      %p244 = por %p242, %p243
      %p245 = scmp.ne.s32.totalorder %s234, %s237
      %p246 = scmp.eq.s32.totalorder %s35, 3
      %p247 = por %p245, %p246
      %p248 = scmp.ne.s32.totalorder %s237, %s238
      %p249 = scmp.eq.s32.totalorder %s35, 0
      %p250 = por %p248, %p249
      %p251 = scmp.ne.s32.totalorder %s237, %s238
      %p252 = scmp.eq.s32.totalorder %s36, 3
      %p253 = por %p251, %p252
      %p255 = scmp.ne.s32.totalorder %s238, %s254
      %p256 = scmp.eq.s32.totalorder %s36, 0
      %p257 = por %p255, %p256
      %s258 = ssub.s32 %s38, %s45
      %p259 = scmp.eq.s32.totalorder %s258, 0
      %s261 = sadd.s32 %s260, 1
      %s262 = scalar_select %p259, %s260, %s261
      %p265 = pneg %p259
      %p266 = scmp.eq.s32.totalorder %s30, 3
      %p267 = por %p265, %p266
      %p268 = scmp.ne.s32.totalorder %s260, %s263
      %p269 = scmp.eq.s32.totalorder %s30, 0
      %p270 = por %p268, %p269
      %p271 = scmp.ne.s32.totalorder %s260, %s263
      %p272 = scmp.eq.s32.totalorder %s35, 3
      %p273 = por %p271, %p272
      %p274 = scmp.ne.s32.totalorder %s263, %s264
      %p275 = scmp.eq.s32.totalorder %s35, 0
      %p276 = por %p274, %p275
      %p277 = scmp.ne.s32.totalorder %s263, %s264
      %p278 = scmp.eq.s32.totalorder %s36, 3
      %p279 = por %p277, %p278
      %p281 = scmp.ne.s32.totalorder %s264, %s280
      %p282 = scmp.eq.s32.totalorder %s36, 0
      %p283 = por %p281, %p282
      %s284 = ssub.s32 %s38, %s45
      %p285 = scmp.eq.s32.totalorder %s284, 0
      %s287 = sadd.s32 %s286, 1
      %s288 = scalar_select %p285, %s286, %s287
      %p291 = pneg %p285
      %p292 = scmp.eq.s32.totalorder %s30, 3
      %p293 = por %p291, %p292
      %p294 = scmp.ne.s32.totalorder %s286, %s289
      %p295 = scmp.eq.s32.totalorder %s30, 0
      %p296 = por %p294, %p295
      %p297 = scmp.ne.s32.totalorder %s286, %s289
      %p298 = scmp.eq.s32.totalorder %s35, 3
      %p299 = por %p297, %p298
      %p300 = scmp.ne.s32.totalorder %s289, %s290
      %p301 = scmp.eq.s32.totalorder %s35, 0
      %p302 = por %p300, %p301
      %p303 = scmp.ne.s32.totalorder %s289, %s290
      %p304 = scmp.eq.s32.totalorder %s36, 3
      %p305 = por %p303, %p304
      %p307 = scmp.ne.s32.totalorder %s290, %s306
      %p308 = scmp.eq.s32.totalorder %s36, 0
      %p309 = por %p307, %p308
      %s310 = ssub.s32 %s38, %s45
      %p311 = scmp.eq.s32.totalorder %s310, 0
      %s313 = sadd.s32 %s312, 1
      %s314 = scalar_select %p311, %s312, %s313
      %p317 = pneg %p311
      %p318 = scmp.eq.s32.totalorder %s30, 3
      %p319 = por %p317, %p318
      %p320 = scmp.ne.s32.totalorder %s312, %s315
      %p321 = scmp.eq.s32.totalorder %s30, 0
      %p322 = por %p320, %p321
      %p323 = scmp.ne.s32.totalorder %s312, %s315
      %p324 = scmp.eq.s32.totalorder %s35, 3
      %p325 = por %p323, %p324
      %p326 = scmp.ne.s32.totalorder %s315, %s316
      %p327 = scmp.eq.s32.totalorder %s35, 0
      %p328 = por %p326, %p327
      %p329 = scmp.ne.s32.totalorder %s315, %s316
      %p330 = scmp.eq.s32.totalorder %s36, 3
      %p331 = por %p329, %p330
      %p333 = scmp.ne.s32.totalorder %s316, %s332
      %p334 = scmp.eq.s32.totalorder %s36, 0
      %p335 = por %p333, %p334
      %s336 = ssub.s32 %s38, %s45
      %p337 = scmp.eq.s32.totalorder %s336, 0
      %s339 = sadd.s32 %s338, 1
      %s340 = scalar_select %p337, %s338, %s339
      %p343 = pneg %p337
      %p344 = scmp.eq.s32.totalorder %s30, 3
      %p345 = por %p343, %p344
      %p346 = scmp.ne.s32.totalorder %s338, %s341
      %p347 = scmp.eq.s32.totalorder %s30, 0
      %p348 = por %p346, %p347
      %p349 = scmp.ne.s32.totalorder %s338, %s341
      %p350 = scmp.eq.s32.totalorder %s35, 3
      %p351 = por %p349, %p350
      %p352 = scmp.ne.s32.totalorder %s341, %s342
      %p353 = scmp.eq.s32.totalorder %s35, 0
      %p354 = por %p352, %p353
      %p355 = scmp.ne.s32.totalorder %s341, %s342
      %p356 = scmp.eq.s32.totalorder %s36, 3
      %p357 = por %p355, %p356
      %p359 = scmp.ne.s32.totalorder %s342, %s358
      %p360 = scmp.eq.s32.totalorder %s36, 0
      %p361 = por %p359, %p360
      %s362 = ssub.s32 %s38, %s45
      %p363 = scmp.eq.s32.totalorder %s362, 0
      %s365 = sadd.s32 %s364, 1
      %s366 = scalar_select %p363, %s364, %s365
      %p369 = pneg %p363
      %p370 = scmp.eq.s32.totalorder %s30, 3
      %p371 = por %p369, %p370
      %p372 = scmp.ne.s32.totalorder %s364, %s367
      %p373 = scmp.eq.s32.totalorder %s30, 0
      %p374 = por %p372, %p373
      %p375 = scmp.ne.s32.totalorder %s364, %s367
      %p376 = scmp.eq.s32.totalorder %s35, 3
      %p377 = por %p375, %p376
      %p378 = scmp.ne.s32.totalorder %s367, %s368
      %p379 = scmp.eq.s32.totalorder %s35, 0
      %p380 = por %p378, %p379
      %p381 = scmp.ne.s32.totalorder %s367, %s368
      %p382 = scmp.eq.s32.totalorder %s36, 3
      %p383 = por %p381, %p382
      %p385 = scmp.ne.s32.totalorder %s368, %s384
      %p386 = scmp.eq.s32.totalorder %s36, 0
      %p387 = por %p385, %p386
      %s388 = ssub.s32 %s38, %s45
      %p389 = scmp.eq.s32.totalorder %s388, 0
      %s391 = sadd.s32 %s390, 1
      %s392 = scalar_select %p389, %s390, %s391
      %p395 = pneg %p389
      %p396 = scmp.eq.s32.totalorder %s30, 3
      %p397 = por %p395, %p396
      %p398 = scmp.ne.s32.totalorder %s390, %s393
      %p399 = scmp.eq.s32.totalorder %s30, 0
      %p400 = por %p398, %p399
      %p401 = scmp.ne.s32.totalorder %s390, %s393
      %p402 = scmp.eq.s32.totalorder %s35, 3
      %p403 = por %p401, %p402
      %p404 = scmp.ne.s32.totalorder %s393, %s394
      %p405 = scmp.eq.s32.totalorder %s35, 0
      %p406 = por %p404, %p405
      %p407 = scmp.ne.s32.totalorder %s393, %s394
      %p408 = scmp.eq.s32.totalorder %s36, 3
      %p409 = por %p407, %p408
      %p411 = scmp.ne.s32.totalorder %s394, %s410
      %p412 = scmp.eq.s32.totalorder %s36, 0
      %p413 = por %p411, %p412
      %s414 = ssub.s32 %s38, %s45
      %p415 = scmp.eq.s32.totalorder %s414, 0
      %s417 = sadd.s32 %s416, 1
      %s418 = scalar_select %p415, %s416, %s417
      %p421 = pneg %p415
      %p422 = scmp.eq.s32.totalorder %s30, 3
      %p423 = por %p421, %p422
      %p424 = scmp.ne.s32.totalorder %s416, %s419
      %p425 = scmp.eq.s32.totalorder %s30, 0
      %p426 = por %p424, %p425
      %p427 = scmp.ne.s32.totalorder %s416, %s419
      %p428 = scmp.eq.s32.totalorder %s35, 3
      %p429 = por %p427, %p428
      %p430 = scmp.ne.s32.totalorder %s419, %s420
      %p431 = scmp.eq.s32.totalorder %s35, 0
      %p432 = por %p430, %p431
      %p433 = scmp.ne.s32.totalorder %s419, %s420
      %p434 = scmp.eq.s32.totalorder %s36, 3
      %p435 = por %p433, %p434
      %p437 = scmp.ne.s32.totalorder %s420, %s436
      %p438 = scmp.eq.s32.totalorder %s36, 0
      %p439 = por %p437, %p438
      %s440 = ssub.s32 %s37, %s49
      %p441 = scmp.eq.s32.totalorder %s440, 0
      %s443 = sadd.s32 %s442, 1
      %s444 = scalar_select %p441, %s442, %s443
      %p447 = pneg %p441
      %p448 = scmp.eq.s32.totalorder %s30, 3
      %p449 = por %p447, %p448
      %p450 = scmp.ne.s32.totalorder %s442, %s445
      %p451 = scmp.eq.s32.totalorder %s30, 0
      %p452 = por %p450, %p451
      %p453 = scmp.ne.s32.totalorder %s442, %s445
      %p454 = scmp.eq.s32.totalorder %s35, 3
      %p455 = por %p453, %p454
      %p456 = scmp.ne.s32.totalorder %s445, %s446
      %p457 = scmp.eq.s32.totalorder %s35, 0
      %p458 = por %p456, %p457
      %p459 = scmp.ne.s32.totalorder %s445, %s446
      %p460 = scmp.eq.s32.totalorder %s36, 3
      %p461 = por %p459, %p460
      %p463 = scmp.ne.s32.totalorder %s446, %s462
      %p464 = scmp.eq.s32.totalorder %s36, 0
      %p465 = por %p463, %p464
      %p466 = scmp.le.s32.totalorder 1, %s30
      %p467 = scmp.lt.s32.totalorder %s30, 5
      %p468 = pnand %p466, %p467
      %p469 = pneg %p468
      // Predicated region
      $region9: #{tpu_custom_call.1} parent=5 // pred_check
        _
      $region10: #{tpu_custom_call.1} parent=5 // pred_check_branch
        %471 = sbr.rel (%p468) target = $region12
      $region11: #{tpu_custom_call.1} parent=5 // pred_region
        %s472 = ssub.s32 %s30, 1
      $region12: #{tpu_custom_call.1} parent=5 // pred_fallthru
        _
      %p473 = scmp.lt.s32.totalorder %s30, 4
      // Predicated region
      $region13: #{tpu_custom_call.1} parent=5 // pred_check
        %p474 = pneg %p473
      $region14: #{tpu_custom_call.1} parent=5 // pred_check_branch
        %476 = sbr.rel (%p474) target = $region16
      $region15: #{tpu_custom_call.1} parent=5 // pred_region
        // Predicated region
        $region17: #{tpu_custom_call.1} parent=15 // pred_check
          %p477 = pneg %p62
        $region18: #{tpu_custom_call.1} parent=15 // pred_check_branch
          %479 = sbr.rel (%p477) target = $region20
        $region19: #{tpu_custom_call.1} parent=15 // pred_region
          %p480 = scmp.lt.s32.totalorder %s37, 1
          %s481 = scalar_select %p480, %s37, 1
          %s482 = smul.addr %s481, 8
          %s483 = scalar_lea.vmem %s0, %s482
        $region20: #{tpu_custom_call.1} parent=15 // pred_fallthru
          _
        // Predicated region
        $region21: #{tpu_custom_call.1} parent=15 // pred_check
          %p484 = pneg %p88
        $region22: #{tpu_custom_call.1} parent=15 // pred_check_branch
          %486 = sbr.rel (%p484) target = $region24
        $region23: #{tpu_custom_call.1} parent=15 // pred_region
          %p487 = scmp.lt.s32.totalorder %s37, 1
          %s488 = scalar_select %p487, %s37, 1
          %s489 = scalar_lea.vmem %s1, %s488
        $region24: #{tpu_custom_call.1} parent=15 // pred_fallthru
          _
        // Predicated region
        $region25: #{tpu_custom_call.1} parent=15 // pred_check
          %p490 = pneg %p114
        $region26: #{tpu_custom_call.1} parent=15 // pred_check_branch
          %492 = sbr.rel (%p490) target = $region28
        $region27: #{tpu_custom_call.1} parent=15 // pred_region
          %p493 = scmp.lt.s32.totalorder %s37, 1
          %s494 = scalar_select %p493, %s37, 1
          %s495 = smul.addr %s494, 8
          %s496 = scalar_lea.vmem %s2, %s495
        $region28: #{tpu_custom_call.1} parent=15 // pred_fallthru
          _
        // Predicated region
        $region29: #{tpu_custom_call.1} parent=15 // pred_check
          %p497 = pneg %p140
        $region30: #{tpu_custom_call.1} parent=15 // pred_check_branch
          %499 = sbr.rel (%p497) target = $region32
        $region31: #{tpu_custom_call.1} parent=15 // pred_region
          %p500 = scmp.lt.s32.totalorder %s38, 1
          %s501 = scalar_select %p500, %s38, 1
          %s502 = smul.addr %s501, 4
          %s503 = smul.addr %s502, 4
          %s504 = scalar_lea.vmem %s3, %s503
        $region32: #{tpu_custom_call.1} parent=15 // pred_fallthru
          _
        // Predicated region
        $region33: #{tpu_custom_call.1} parent=15 // pred_check
          %p505 = pneg %p166
        $region34: #{tpu_custom_call.1} parent=15 // pred_check_branch
          %507 = sbr.rel (%p505) target = $region36
        $region35: #{tpu_custom_call.1} parent=15 // pred_region
          %p508 = scmp.lt.s32.totalorder %s38, 1
          %s509 = scalar_select %p508, %s38, 1
          %s510 = smul.addr %s509, 4
          %s511 = smul.addr %s510, 4
          %s512 = scalar_lea.vmem %s4, %s511
        $region36: #{tpu_custom_call.1} parent=15 // pred_fallthru
          _
        // Predicated region
        $region37: #{tpu_custom_call.1} parent=15 // pred_check
          %p513 = pneg %p192
        $region38: #{tpu_custom_call.1} parent=15 // pred_check_branch
          %515 = sbr.rel (%p513) target = $region40
        $region39: #{tpu_custom_call.1} parent=15 // pred_region
          %p516 = scmp.lt.s32.totalorder %s38, 1
          %s517 = scalar_select %p516, %s38, 1
          %s518 = smul.addr %s517, 4
          %s519 = smul.addr %s518, 4
          %s520 = scalar_lea.vmem %s5, %s519
        $region40: #{tpu_custom_call.1} parent=15 // pred_fallthru
          _
        // Predicated region
        $region41: #{tpu_custom_call.1} parent=15 // pred_check
          %p521 = pneg %p218
        $region42: #{tpu_custom_call.1} parent=15 // pred_check_branch
          %523 = sbr.rel (%p521) target = $region44
        $region43: #{tpu_custom_call.1} parent=15 // pred_region
          %s524 = sand.u32 %s208, 1
          %s525 = scalar_lea.sflag [#allocation3], %s524
          %s526 = sand.u32 %s208, 1
          %s527 = smul.addr %s526, 16
          %s528 = scalar_lea.vmem [#allocation2], %s527
          %s530 = ssub.s32 256, 256
          %531 = vsyncadd %s525, %s530
          %s532 = smul.addr %s38, 4
          %s533 = smul.addr %s532, 64
          %s534 = scalar_lea.hbm %s6, %s533
          %s535 = sshll.u32 %s528, 4
          %s536 = int_to_ptr.vmem [resolvable:$true] %s535
          %541 = dma.hbm_to_vmem [thread:$0]  %s534, 256, %s536, %s525, 64, 64, 4
        $region44: #{tpu_custom_call.1} parent=15 // pred_fallthru
          _
        // Predicated region
        $region45: #{tpu_custom_call.1} parent=15 // pred_check
          %p542 = pneg %p244
        $region46: #{tpu_custom_call.1} parent=15 // pred_check_branch
          %544 = sbr.rel (%p542) target = $region48
        $region47: #{tpu_custom_call.1} parent=15 // pred_region
          %s545 = sand.u32 %s234, 1
          %s546 = scalar_lea.sflag [#allocation6], %s545
          %s547 = sand.u32 %s234, 1
          %s548 = smul.addr %s547, 16
          %s549 = scalar_lea.vmem [#allocation5], %s548
          %s551 = ssub.s32 256, 256
          %552 = vsyncadd %s546, %s551
          %s553 = smul.addr %s38, 4
          %s554 = smul.addr %s553, 64
          %s555 = scalar_lea.hbm %s7, %s554
          %s556 = sshll.u32 %s549, 4
          %s557 = int_to_ptr.vmem [resolvable:$true] %s556
          %562 = dma.hbm_to_vmem [thread:$0]  %s555, 256, %s557, %s546, 64, 64, 4
        $region48: #{tpu_custom_call.1} parent=15 // pred_fallthru
          _
        // Predicated region
        $region49: #{tpu_custom_call.1} parent=15 // pred_check
          %p563 = pneg %p270
        $region50: #{tpu_custom_call.1} parent=15 // pred_check_branch
          %565 = sbr.rel (%p563) target = $region52
        $region51: #{tpu_custom_call.1} parent=15 // pred_region
          %p566 = scmp.lt.s32.totalorder %s38, 1
          %s567 = scalar_select %p566, %s38, 1
          %s568 = scalar_lea.vmem %s8, %s567
        $region52: #{tpu_custom_call.1} parent=15 // pred_fallthru
          _
        // Predicated region
        $region53: #{tpu_custom_call.1} parent=15 // pred_check
          %p569 = pneg %p296
        $region54: #{tpu_custom_call.1} parent=15 // pred_check_branch
          %571 = sbr.rel (%p569) target = $region56
        $region55: #{tpu_custom_call.1} parent=15 // pred_region
          %p572 = scmp.lt.s32.totalorder %s38, 1
          %s573 = scalar_select %p572, %s38, 1
          %s574 = smul.addr %s573, 8
          %s575 = smul.addr %s574, 4
          %s576 = scalar_lea.vmem %s9, %s575
        $region56: #{tpu_custom_call.1} parent=15 // pred_fallthru
          _
        // Predicated region
        $region57: #{tpu_custom_call.1} parent=15 // pred_check
          %p577 = pneg %p322
        $region58: #{tpu_custom_call.1} parent=15 // pred_check_branch
          %579 = sbr.rel (%p577) target = $region60
        $region59: #{tpu_custom_call.1} parent=15 // pred_region
          %p580 = scmp.lt.s32.totalorder %s38, 1
          %s581 = scalar_select %p580, %s38, 1
          %s582 = scalar_lea.vmem %s10, %s581
        $region60: #{tpu_custom_call.1} parent=15 // pred_fallthru
          _
        // Predicated region
        $region61: #{tpu_custom_call.1} parent=15 // pred_check
          %p583 = pneg %p348
        $region62: #{tpu_custom_call.1} parent=15 // pred_check_branch
          %585 = sbr.rel (%p583) target = $region64
        $region63: #{tpu_custom_call.1} parent=15 // pred_region
          %p586 = scmp.lt.s32.totalorder %s38, 1
          %s587 = scalar_select %p586, %s38, 1
          %s588 = scalar_lea.vmem %s11, %s587
        $region64: #{tpu_custom_call.1} parent=15 // pred_fallthru
          _
        // Predicated region
        $region65: #{tpu_custom_call.1} parent=15 // pred_check
          %p589 = pneg %p374
        $region66: #{tpu_custom_call.1} parent=15 // pred_check_branch
          %591 = sbr.rel (%p589) target = $region68
        $region67: #{tpu_custom_call.1} parent=15 // pred_region
          %p592 = scmp.lt.s32.totalorder %s38, 1
          %s593 = scalar_select %p592, %s38, 1
          %s594 = scalar_lea.vmem %s12, %s593
        $region68: #{tpu_custom_call.1} parent=15 // pred_fallthru
          _
        // Predicated region
        $region69: #{tpu_custom_call.1} parent=15 // pred_check
          %p595 = pneg %p400
        $region70: #{tpu_custom_call.1} parent=15 // pred_check_branch
          %597 = sbr.rel (%p595) target = $region72
        $region71: #{tpu_custom_call.1} parent=15 // pred_region
          %p598 = scmp.lt.s32.totalorder %s38, 1
          %s599 = scalar_select %p598, %s38, 1
          %s600 = scalar_lea.vmem %s13, %s599
        $region72: #{tpu_custom_call.1} parent=15 // pred_fallthru
          _
        // Predicated region
        $region73: #{tpu_custom_call.1} parent=15 // pred_check
          %p601 = pneg %p426
        $region74: #{tpu_custom_call.1} parent=15 // pred_check_branch
          %603 = sbr.rel (%p601) target = $region76
        $region75: #{tpu_custom_call.1} parent=15 // pred_region
          %p604 = scmp.lt.s32.totalorder %s38, 1
          %s605 = scalar_select %p604, %s38, 1
          %s606 = scalar_lea.vmem %s14, %s605
        $region76: #{tpu_custom_call.1} parent=15 // pred_fallthru
          _
      $region16: #{tpu_custom_call.1} parent=5 // pred_fallthru
        _
      %p607 = scmp.le.s32.totalorder 1, %s30
      %p608 = scmp.lt.s32.totalorder %s30, 5
      %p609 = pnand %p607, %p608
      %p610 = pneg %p609
      // Predicated region
      $region77: #{tpu_custom_call.1} parent=5 // pred_check
        _
      $region78: #{tpu_custom_call.1} parent=5 // pred_check_branch
        %612 = sbr.rel (%p609) target = $region80
      $region79: #{tpu_custom_call.1} parent=5 // pred_region
        %s613 = ssub.s32 %s30, 1
        %s614 = sand.u32 %s211, 1
        %s615 = scalar_lea.sflag [#allocation3], %s614
        %s616 = sand.u32 %s211, 1
        %s617 = smul.addr %s616, 16
        %s618 = scalar_lea.vmem [#allocation2], %s617
        // Predicated region
        $region81: #{tpu_custom_call.1} parent=79 // pred_check
          %p619 = pneg %p224
        $region82: #{tpu_custom_call.1} parent=79 // pred_check_branch
          %621 = sbr.rel (%p619) target = $region84
        $region83: #{tpu_custom_call.1} parent=79 // pred_region
          %622 = dma.done %s615, 256
        $region84: #{tpu_custom_call.1} parent=79 // pred_fallthru
          _
        %s623 = sand.u32 %s237, 1
        %s624 = scalar_lea.sflag [#allocation6], %s623
        %s625 = sand.u32 %s237, 1
        %s626 = smul.addr %s625, 16
        %s627 = scalar_lea.vmem [#allocation5], %s626
        // Predicated region
        $region85: #{tpu_custom_call.1} parent=79 // pred_check
          %p628 = pneg %p250
        $region86: #{tpu_custom_call.1} parent=79 // pred_check_branch
          %630 = sbr.rel (%p628) target = $region88
        $region87: #{tpu_custom_call.1} parent=79 // pred_region
          %631 = dma.done %s624, 256
        $region88: #{tpu_custom_call.1} parent=79 // pred_fallthru
          _
        %p632 = scmp.lt.s32.totalorder %s39, 1
        %s633 = scalar_select %p632, %s39, 1
        %s634 = smul.addr %s633, 8
        %s635 = scalar_lea.vmem %s0, %s634
        %p636 = pneg %p68
        %p637 = pneg %p65
        %p638 = scmp.lt.s32.totalorder %s39, 1
        %s639 = scalar_select %p638, %s39, 1
        %s640 = scalar_lea.vmem %s1, %s639
        %p641 = pneg %p94
        %p642 = pneg %p91
        %p643 = scmp.lt.s32.totalorder %s39, 1
        %s644 = scalar_select %p643, %s39, 1
        %s645 = smul.addr %s644, 8
        %s646 = scalar_lea.vmem %s2, %s645
        %p647 = pneg %p120
        %p648 = pneg %p117
        %p649 = scmp.lt.s32.totalorder %s40, 1
        %s650 = scalar_select %p649, %s40, 1
        %s651 = smul.addr %s650, 4
        %s652 = smul.addr %s651, 4
        %s653 = scalar_lea.vmem %s3, %s652
        %p654 = pneg %p146
        %p655 = pneg %p143
        %p656 = scmp.lt.s32.totalorder %s40, 1
        %s657 = scalar_select %p656, %s40, 1
        %s658 = smul.addr %s657, 4
        %s659 = smul.addr %s658, 4
        %s660 = scalar_lea.vmem %s4, %s659
        %p661 = pneg %p172
        %p662 = pneg %p169
        %p663 = scmp.lt.s32.totalorder %s40, 1
        %s664 = scalar_select %p663, %s40, 1
        %s665 = smul.addr %s664, 4
        %s666 = smul.addr %s665, 4
        %s667 = scalar_lea.vmem %s5, %s666
        %p668 = pneg %p198
        %p669 = pneg %p195
        %s670 = sand.u32 %s211, 1
        %s671 = scalar_lea.sflag [#allocation3], %s670
        %s672 = sand.u32 %s211, 1
        %s673 = smul.addr %s672, 16
        %s674 = scalar_lea.vmem [#allocation2], %s673
        %p675 = pneg %p224
        %p676 = pneg %p221
        %s677 = sand.u32 %s237, 1
        %s678 = scalar_lea.sflag [#allocation6], %s677
        %s679 = sand.u32 %s237, 1
        %s680 = smul.addr %s679, 16
        %s681 = scalar_lea.vmem [#allocation5], %s680
        %p682 = pneg %p250
        %p683 = pneg %p247
        %p684 = scmp.lt.s32.totalorder %s40, 1
        %s685 = scalar_select %p684, %s40, 1
        %s686 = scalar_lea.vmem %s8, %s685
        %p687 = pneg %p276
        %p688 = pneg %p273
        %p689 = scmp.lt.s32.totalorder %s40, 1
        %s690 = scalar_select %p689, %s40, 1
        %s691 = smul.addr %s690, 8
        %s692 = smul.addr %s691, 4
        %s693 = scalar_lea.vmem %s9, %s692
        %p694 = pneg %p302
        %p695 = pneg %p299
        %p696 = scmp.lt.s32.totalorder %s40, 1
        %s697 = scalar_select %p696, %s40, 1
        %s698 = scalar_lea.vmem %s10, %s697
        %p699 = pneg %p328
        %p700 = pneg %p325
        %p701 = scmp.lt.s32.totalorder %s40, 1
        %s702 = scalar_select %p701, %s40, 1
        %s703 = scalar_lea.vmem %s11, %s702
        %p704 = pneg %p354
        %p705 = pneg %p351
        %p706 = scmp.lt.s32.totalorder %s40, 1
        %s707 = scalar_select %p706, %s40, 1
        %s708 = scalar_lea.vmem %s12, %s707
        %p709 = pneg %p380
        %p710 = pneg %p377
        %p711 = scmp.lt.s32.totalorder %s40, 1
        %s712 = scalar_select %p711, %s40, 1
        %s713 = scalar_lea.vmem %s13, %s712
        %p714 = pneg %p406
        %p715 = pneg %p403
        %p716 = scmp.lt.s32.totalorder %s40, 1
        %s717 = scalar_select %p716, %s40, 1
        %s718 = scalar_lea.vmem %s14, %s717
        %p719 = pneg %p432
        %p720 = pneg %p429
        %p721 = pneg %p458
        %p722 = pneg %p455
        %s723 = sand.u32 %s445, 1
        %s724 = scalar_lea.sflag [#allocation4], %s723
        %s725 = sand.u32 %s445, 1
        %s726 = smul.addr %s725, 8
        %s727 = scalar_lea.vmem [#allocation7], %s726
        %p728 = scmp.lt.s32.totalorder %s39, 1
        %s729 = scalar_select %p728, %s39, 1
        %s730 = smul.addr %s729, 8
        %s731 = scalar_lea.vmem %s0, %s730
        %p732 = scmp.lt.s32.totalorder %s39, 1
        %s733 = scalar_select %p732, %s39, 1
        %s734 = scalar_lea.vmem %s1, %s733
        %p735 = scmp.lt.s32.totalorder %s39, 1
        %s736 = scalar_select %p735, %s39, 1
        %s737 = smul.addr %s736, 8
        %s738 = scalar_lea.vmem %s2, %s737
        %p739 = scmp.lt.s32.totalorder %s40, 1
        %s740 = scalar_select %p739, %s40, 1
        %s741 = smul.addr %s740, 4
        %s742 = smul.addr %s741, 4
        %s743 = scalar_lea.vmem %s3, %s742
        %p744 = scmp.lt.s32.totalorder %s40, 1
        %s745 = scalar_select %p744, %s40, 1
        %s746 = smul.addr %s745, 4
        %s747 = smul.addr %s746, 4
        %s748 = scalar_lea.vmem %s4, %s747
        %p749 = scmp.lt.s32.totalorder %s40, 1
        %s750 = scalar_select %p749, %s40, 1
        %s751 = smul.addr %s750, 4
        %s752 = smul.addr %s751, 4
        %s753 = scalar_lea.vmem %s5, %s752
        %p754 = scmp.lt.s32.totalorder %s40, 1
        %s755 = scalar_select %p754, %s40, 1
        %s756 = scalar_lea.vmem %s8, %s755
        %p757 = scmp.lt.s32.totalorder %s40, 1
        %s758 = scalar_select %p757, %s40, 1
        %s759 = smul.addr %s758, 8
        %s760 = smul.addr %s759, 4
        %s761 = scalar_lea.vmem %s9, %s760
        %p762 = scmp.lt.s32.totalorder %s40, 1
        %s763 = scalar_select %p762, %s40, 1
        %s764 = scalar_lea.vmem %s10, %s763
        %p765 = scmp.lt.s32.totalorder %s40, 1
        %s766 = scalar_select %p765, %s40, 1
        %s767 = scalar_lea.vmem %s11, %s766
        %p768 = scmp.lt.s32.totalorder %s40, 1
        %s769 = scalar_select %p768, %s40, 1
        %s770 = scalar_lea.vmem %s12, %s769
        %p771 = scmp.lt.s32.totalorder %s40, 1
        %s772 = scalar_select %p771, %s40, 1
        %s773 = scalar_lea.vmem %s13, %s772
        %p774 = scmp.lt.s32.totalorder %s40, 1
        %s775 = scalar_select %p774, %s40, 1
        %s776 = scalar_lea.vmem %s14, %s775
        %p778 = scmp.eq.s32.totalorder %s40, 0
        // Predicated region
        $region89: #{tpu_custom_call.1} parent=79 // pred_check
          %p779 = pneg %p778
        $region90: #{tpu_custom_call.1} parent=79 // pred_check_branch
          %781 = sbr.rel (%p779) target = $region92
        $region91: #{tpu_custom_call.1} parent=79 // pred_region
          %v782 = vld [vmem:[%s731] sm:$0xff]
          %vm783 = vcmask 261120
          %784 = vst.msk [vmem:[%s727] sm:$0xff] %vm783, %v782
        $region92: #{tpu_custom_call.1} parent=79 // pred_fallthru
          _
        %v785 = vld [vmem:[%s727] sm:$0xff]
        %v786 = vpack.c.bf16 %v785, %v785
        %v787 = vld [vmem:[%s734] sm:$0x1]
        %v788 = vld [vmem:[%s738] sm:$0xff]
        %v789 = vld [vmem:[%s743] sm:$0xf]
        %v790 = vld [vmem:[%s743 + $0x4] sm:$0xf]
        %v791 = vld [vmem:[%s743 + $0x8] sm:$0xf]
        %v792 = vld [vmem:[%s743 + $0xc] sm:$0xf]
        %v797 = vunpack.c.l.b16 %v789
        %v798 = vunpack.c.l.b16 %v790
        %v799 = vunpack.c.l.b16 %v791
        %v800 = vunpack.c.l.b16 %v792
        %v801 = vpack.c.b16 %v798, %v797
        %v802 = vpack.c.b16 %v800, %v799
        %vm805 = vcmask 261120
        %v807 = vsel %vm805, %v786, 0
        %809 = vmatprep.subr.bf16.mxu0 0
        %810 = vmatpush1.bf16.msra.mxu0 %v801
        %811 = vmatprep.subr.bf16.mxu0 0
        %812 = vmatpush1.bf16.msra.mxu0 %v802
        %813 = vmatprep.subr.bf16.mxu0 0
        %814 = vmatpush1.bf16.msra.mxu0 0
        %815 = vmatprep.subr.bf16.mxu0 0
        %816 = vmatpush1.bf16.msra.mxu0 0
        %817 = vmatprep.subr.bf16.mxu0 0
        %818 = vmatpush1.bf16.msra.mxu0 0
        %819 = vmatprep.subr.bf16.mxu0 0
        %820 = vmatpush1.bf16.msra.mxu0 0
        %821 = vmatprep.subr.bf16.mxu0 0
        %822 = vmatpush1.bf16.msra.mxu0 0
        %823 = vmatprep.subr.bf16.mxu0 0
        %824 = vmatpush1.bf16.msra.mxu0 0
        %825 = vmatprep.subr.bf16.mxu0 0
        %826 = vmatpush1.bf16.msra.mxu0 0
        %827 = vmatprep.subr.bf16.mxu0 0
        %828 = vmatpush1.bf16.msra.mxu0 0
        %829 = vmatprep.subr.bf16.mxu0 0
        %830 = vmatpush1.bf16.msra.mxu0 0
        %831 = vmatprep.subr.bf16.mxu0 0
        %832 = vmatpush1.bf16.msra.mxu0 0
        %833 = vmatprep.subr.bf16.mxu0 0
        %834 = vmatpush1.bf16.msra.mxu0 0
        %835 = vmatprep.subr.bf16.mxu0 0
        %836 = vmatpush1.bf16.msra.mxu0 0
        %837 = vmatprep.subr.bf16.mxu0 0
        %838 = vmatpush1.bf16.msra.mxu0 0
        %839 = vmatprep.subr.bf16.mxu0 0
        %840 = vmatpush1.bf16.msra.mxu0 0
        %841 = vmatprep.mubr.bf16.mxu0 0
        %842 = vmatmul.mubr.bf16.gmra.mrb[0].mxu0 %v807
        %v843 = vpop.f32.mrb[0].mxu0
        %v844 = vadd.f32 0.0, %v843
        %v845 = vpop.f32.mrb[0].mxu0
        %v846 = vpop.f32.mrb[0].mxu0
        %v847 = vpop.f32.mrb[0].mxu0
        %848 = vdwg.mxu0
        %v849 = vld [vmem:[%s748] sm:$0xf]
        %v850 = vld [vmem:[%s748 + $0x4] sm:$0xf]
        %v851 = vld [vmem:[%s748 + $0x8] sm:$0xf]
        %v852 = vld [vmem:[%s748 + $0xc] sm:$0xf]
        %v857 = vunpack.c.l.b16 %v849
        %v858 = vunpack.c.l.b16 %v850
        %v859 = vunpack.c.l.b16 %v851
        %v860 = vunpack.c.l.b16 %v852
        %v861 = vpack.c.b16 %v858, %v857
        %v862 = vpack.c.b16 %v860, %v859
        %865 = vmatprep.subr.bf16.mxu0 0
        %866 = vmatpush1.bf16.msra.mxu0 %v861
        %867 = vmatprep.subr.bf16.mxu0 0
        %868 = vmatpush1.bf16.msra.mxu0 %v862
        %869 = vmatprep.subr.bf16.mxu0 0
        %870 = vmatpush1.bf16.msra.mxu0 0
        %871 = vmatprep.subr.bf16.mxu0 0
        %872 = vmatpush1.bf16.msra.mxu0 0
        %873 = vmatprep.subr.bf16.mxu0 0
        %874 = vmatpush1.bf16.msra.mxu0 0
        %875 = vmatprep.subr.bf16.mxu0 0
        %876 = vmatpush1.bf16.msra.mxu0 0
        %877 = vmatprep.subr.bf16.mxu0 0
        %878 = vmatpush1.bf16.msra.mxu0 0
        %879 = vmatprep.subr.bf16.mxu0 0
        %880 = vmatpush1.bf16.msra.mxu0 0
        %881 = vmatprep.subr.bf16.mxu0 0
        %882 = vmatpush1.bf16.msra.mxu0 0
        %883 = vmatprep.subr.bf16.mxu0 0
        %884 = vmatpush1.bf16.msra.mxu0 0
        %885 = vmatprep.subr.bf16.mxu0 0
        %886 = vmatpush1.bf16.msra.mxu0 0
        %887 = vmatprep.subr.bf16.mxu0 0
        %888 = vmatpush1.bf16.msra.mxu0 0
        %889 = vmatprep.subr.bf16.mxu0 0
        %890 = vmatpush1.bf16.msra.mxu0 0
        %891 = vmatprep.subr.bf16.mxu0 0
        %892 = vmatpush1.bf16.msra.mxu0 0
        %893 = vmatprep.subr.bf16.mxu0 0
        %894 = vmatpush1.bf16.msra.mxu0 0
        %895 = vmatprep.subr.bf16.mxu0 0
        %896 = vmatpush1.bf16.msra.mxu0 0
        %897 = vmatprep.mubr.bf16.mxu0 0
        %898 = vmatmul.mubr.bf16.gmra.mrb[0].mxu0 %v807
        %v899 = vpop.f32.mrb[0].mxu0
        %v900 = vadd.f32 0.0, %v899
        %v901 = vpop.f32.mrb[0].mxu0
        %v902 = vpop.f32.mrb[0].mxu0
        %v903 = vpop.f32.mrb[0].mxu0
        %904 = vdwg.mxu0
        %v905 = vld [vmem:[%s753] sm:$0xf]
        %v906 = vld [vmem:[%s753 + $0x4] sm:$0xf]
        %v907 = vld [vmem:[%s753 + $0x8] sm:$0xf]
        %v908 = vld [vmem:[%s753 + $0xc] sm:$0xf]
        %v913 = vunpack.c.l.b16 %v905
        %v914 = vunpack.c.l.b16 %v906
        %v915 = vunpack.c.l.b16 %v907
        %v916 = vunpack.c.l.b16 %v908
        %v917 = vpack.c.b16 %v914, %v913
        %v918 = vpack.c.b16 %v916, %v915
        %921 = vmatprep.subr.bf16.mxu0 0
        %922 = vmatpush1.bf16.msra.mxu0 %v917
        %923 = vmatprep.subr.bf16.mxu0 0
        %924 = vmatpush1.bf16.msra.mxu0 %v918
        %925 = vmatprep.subr.bf16.mxu0 0
        %926 = vmatpush1.bf16.msra.mxu0 0
        %927 = vmatprep.subr.bf16.mxu0 0
        %928 = vmatpush1.bf16.msra.mxu0 0
        %929 = vmatprep.subr.bf16.mxu0 0
        %930 = vmatpush1.bf16.msra.mxu0 0
        %931 = vmatprep.subr.bf16.mxu0 0
        %932 = vmatpush1.bf16.msra.mxu0 0
        %933 = vmatprep.subr.bf16.mxu0 0
        %934 = vmatpush1.bf16.msra.mxu0 0
        %935 = vmatprep.subr.bf16.mxu0 0
        %936 = vmatpush1.bf16.msra.mxu0 0
        %937 = vmatprep.subr.bf16.mxu0 0
        %938 = vmatpush1.bf16.msra.mxu0 0
        %939 = vmatprep.subr.bf16.mxu0 0
        %940 = vmatpush1.bf16.msra.mxu0 0
        %941 = vmatprep.subr.bf16.mxu0 0
        %942 = vmatpush1.bf16.msra.mxu0 0
        %943 = vmatprep.subr.bf16.mxu0 0
        %944 = vmatpush1.bf16.msra.mxu0 0
        %945 = vmatprep.subr.bf16.mxu0 0
        %946 = vmatpush1.bf16.msra.mxu0 0
        %947 = vmatprep.subr.bf16.mxu0 0
        %948 = vmatpush1.bf16.msra.mxu0 0
        %949 = vmatprep.subr.bf16.mxu0 0
        %950 = vmatpush1.bf16.msra.mxu0 0
        %951 = vmatprep.subr.bf16.mxu0 0
        %952 = vmatpush1.bf16.msra.mxu0 0
        %953 = vmatprep.mubr.bf16.mxu0 0
        %954 = vmatmul.mubr.bf16.gmra.mrb[0].mxu0 %v807
        %v955 = vpop.f32.mrb[0].mxu0
        %v956 = vadd.f32 0.0, %v955
        %v957 = vpop.f32.mrb[0].mxu0
        %v958 = vpop.f32.mrb[0].mxu0
        %v959 = vpop.f32.mrb[0].mxu0
        %960 = vdwg.mxu0
        %v961 = vpack.c.bf16 %v844, %v844
        %v962 = vpack.c.bf16 %v900, %v900
        %v963 = vpack.c.bf16 %v956, %v956
        %vm964 = vcmask 64512
        %v966 = vsel %vm964, %v961, 0
        %v969 = vsel %vm964, %v962, 0
        %971 = vmatprep.subr.bf16.mxu0 0
        %972 = vmatpush1.bf16.xpose.msra.mxu0 %v969
        %973 = vmatprep.subr.bf16.mxu0 0
        %974 = vmatpush1.bf16.xpose.msra.mxu0 0
        %975 = vmatprep.subr.bf16.mxu0 0
        %976 = vmatpush1.bf16.xpose.msra.mxu0 0
        %977 = vmatprep.subr.bf16.mxu0 0
        %978 = vmatpush1.bf16.xpose.msra.mxu0 0
        %979 = vmatprep.subr.bf16.mxu0 0
        %980 = vmatpush1.bf16.xpose.msra.mxu0 0
        %981 = vmatprep.subr.bf16.mxu0 0
        %982 = vmatpush1.bf16.xpose.msra.mxu0 0
        %983 = vmatprep.subr.bf16.mxu0 0
        %984 = vmatpush1.bf16.xpose.msra.mxu0 0
        %985 = vmatprep.subr.bf16.mxu0 0
        %986 = vmatpush1.bf16.xpose.msra.mxu0 0
        %987 = vmatprep.subr.bf16.mxu0 0
        %988 = vmatpush1.bf16.xpose.msra.mxu0 0
        %989 = vmatprep.subr.bf16.mxu0 0
        %990 = vmatpush1.bf16.xpose.msra.mxu0 0
        %991 = vmatprep.subr.bf16.mxu0 0
        %992 = vmatpush1.bf16.xpose.msra.mxu0 0
        %993 = vmatprep.subr.bf16.mxu0 0
        %994 = vmatpush1.bf16.xpose.msra.mxu0 0
        %995 = vmatprep.subr.bf16.mxu0 0
        %996 = vmatpush1.bf16.xpose.msra.mxu0 0
        %997 = vmatprep.subr.bf16.mxu0 0
        %998 = vmatpush1.bf16.xpose.msra.mxu0 0
        %999 = vmatprep.subr.bf16.mxu0 0
        %1000 = vmatpush1.bf16.xpose.msra.mxu0 0
        %1001 = vmatprep.subr.bf16.mxu0 0
        %1002 = vmatpush1.bf16.xpose.msra.mxu0 0
        %1003 = vmatprep.mubr.bf16.mxu0 0
        %1004 = vmatmul.mubr.bf16.gmra.mrb[0].mxu0 %v966
        %v1005 = vpop.f32.mrb[0].mxu0
        %v1006 = vadd.f32 0.0, %v1005
        %v1007 = vpop.f32.mrb[0].mxu0
        %v1008 = vpop.f32.mrb[0].mxu0
        %v1009 = vpop.f32.mrb[0].mxu0
        %1010 = vdwg.mxu0
        %v1011 = vmul.f32 %v1006, 0.35355338
        %v1013 = vlaneseq
        %v1014 = vshrl.u32 %v1013, 7
        %v1015 = vsub.s32 0, %v1014
        %v1016 = vrot.slane %v787, %v1015
        %v1018 = vadd.f32 %v1011, %v1016
        %v1019 = vsel %vm964, %v1018, -inf
        %1020 = vmax.xlane.f32.xlu0 %v1019
        %v1021 = vpop.xlane.xlu0 %1020
        %v1022 = vsub.f32 %v1018, %v1021
        %v1023 = vmul.f32 %v1022, 1.442695
        %v1024 = vpow.pop %v1023
        %v1025 = vsel %vm964, %v1024, 0.0
        %1026 = vadd.xlane.f32.xlu0 %v1025
        %v1027 = vpop.xlane.xlu0 %1026
        %v1028 = vrcp.pop %v1027
        %v1029 = vmul.f32 %v1024, %v1028
        %v1030 = vpack.c.bf16 %v1029, %v1029
        %v1032 = vsel %vm964, %v1030, 0
        %vm1034 = vcmask 1043456
        %v1036 = vsel %vm1034, %v963, 0
        %1038 = vmatprep.subr.bf16.mxu0 0
        %1039 = vmatpush1.bf16.msra.mxu0 %v1036
        %1040 = vmatprep.subr.bf16.mxu0 0
        %1041 = vmatpush1.bf16.msra.mxu0 0
        %1042 = vmatprep.subr.bf16.mxu0 0
        %1043 = vmatpush1.bf16.msra.mxu0 0
        %1044 = vmatprep.subr.bf16.mxu0 0
        %1045 = vmatpush1.bf16.msra.mxu0 0
        %1046 = vmatprep.subr.bf16.mxu0 0
        %1047 = vmatpush1.bf16.msra.mxu0 0
        %1048 = vmatprep.subr.bf16.mxu0 0
        %1049 = vmatpush1.bf16.msra.mxu0 0
        %1050 = vmatprep.subr.bf16.mxu0 0
        %1051 = vmatpush1.bf16.msra.mxu0 0
        %1052 = vmatprep.subr.bf16.mxu0 0
        %1053 = vmatpush1.bf16.msra.mxu0 0
        %1054 = vmatprep.subr.bf16.mxu0 0
        %1055 = vmatpush1.bf16.msra.mxu0 0
        %1056 = vmatprep.subr.bf16.mxu0 0
        %1057 = vmatpush1.bf16.msra.mxu0 0
        %1058 = vmatprep.subr.bf16.mxu0 0
        %1059 = vmatpush1.bf16.msra.mxu0 0
        %1060 = vmatprep.subr.bf16.mxu0 0
        %1061 = vmatpush1.bf16.msra.mxu0 0
        %1062 = vmatprep.subr.bf16.mxu0 0
        %1063 = vmatpush1.bf16.msra.mxu0 0
        %1064 = vmatprep.subr.bf16.mxu0 0
        %1065 = vmatpush1.bf16.msra.mxu0 0
        %1066 = vmatprep.subr.bf16.mxu0 0
        %1067 = vmatpush1.bf16.msra.mxu0 0
        %1068 = vmatprep.subr.bf16.mxu0 0
        %1069 = vmatpush1.bf16.msra.mxu0 0
        %1070 = vmatprep.mubr.bf16.mxu0 0
        %1071 = vmatmul.mubr.bf16.gmra.mrb[0].mxu0 %v1032
        %v1072 = vpop.f32.mrb[0].mxu0
        %v1073 = vadd.f32 0.0, %v1072
        %v1074 = vpop.f32.mrb[0].mxu0
        %v1075 = vpop.f32.mrb[0].mxu0
        %v1076 = vpop.f32.mrb[0].mxu0
        %1077 = vdwg.mxu0
        %1079 = vrot.lane.b32.xlu0 %v961, 120
        %v1080 = vpop.permute.xlu0 %1079
        %1082 = vrot.lane.b32.xlu0 %v962, 120
        %v1083 = vpop.permute.xlu0 %1082
        %v1085 = vsel %vm964, %v1080, 0
        %v1088 = vsel %vm964, %v1083, 0
        %1090 = vmatprep.subr.bf16.mxu0 0
        %1091 = vmatpush1.bf16.xpose.msra.mxu0 %v1088
        %1092 = vmatprep.subr.bf16.mxu0 0
        %1093 = vmatpush1.bf16.xpose.msra.mxu0 0
        %1094 = vmatprep.subr.bf16.mxu0 0
        %1095 = vmatpush1.bf16.xpose.msra.mxu0 0
        %1096 = vmatprep.subr.bf16.mxu0 0
        %1097 = vmatpush1.bf16.xpose.msra.mxu0 0
        %1098 = vmatprep.subr.bf16.mxu0 0
        %1099 = vmatpush1.bf16.xpose.msra.mxu0 0
        %1100 = vmatprep.subr.bf16.mxu0 0
        %1101 = vmatpush1.bf16.xpose.msra.mxu0 0
        %1102 = vmatprep.subr.bf16.mxu0 0
        %1103 = vmatpush1.bf16.xpose.msra.mxu0 0
        %1104 = vmatprep.subr.bf16.mxu0 0
        %1105 = vmatpush1.bf16.xpose.msra.mxu0 0
        %1106 = vmatprep.subr.bf16.mxu0 0
        %1107 = vmatpush1.bf16.xpose.msra.mxu0 0
        %1108 = vmatprep.subr.bf16.mxu0 0
        %1109 = vmatpush1.bf16.xpose.msra.mxu0 0
        %1110 = vmatprep.subr.bf16.mxu0 0
        %1111 = vmatpush1.bf16.xpose.msra.mxu0 0
        %1112 = vmatprep.subr.bf16.mxu0 0
        %1113 = vmatpush1.bf16.xpose.msra.mxu0 0
        %1114 = vmatprep.subr.bf16.mxu0 0
        %1115 = vmatpush1.bf16.xpose.msra.mxu0 0
        %1116 = vmatprep.subr.bf16.mxu0 0
        %1117 = vmatpush1.bf16.xpose.msra.mxu0 0
        %1118 = vmatprep.subr.bf16.mxu0 0
        %1119 = vmatpush1.bf16.xpose.msra.mxu0 0
        %1120 = vmatprep.subr.bf16.mxu0 0
        %1121 = vmatpush1.bf16.xpose.msra.mxu0 0
        %1122 = vmatprep.mubr.bf16.mxu0 0
        %1123 = vmatmul.mubr.bf16.gmra.mrb[0].mxu0 %v1085
        %v1124 = vpop.f32.mrb[0].mxu0
        %v1125 = vadd.f32 0.0, %v1124
        %v1126 = vpop.f32.mrb[0].mxu0
        %v1127 = vpop.f32.mrb[0].mxu0
        %v1128 = vpop.f32.mrb[0].mxu0
        %1129 = vdwg.mxu0
        %v1130 = vmul.f32 %v1125, 0.35355338
        %v1131 = vadd.f32 %v1130, %v1016
        %v1132 = vsel %vm964, %v1131, -inf
        %1133 = vmax.xlane.f32.xlu0 %v1132
        %v1134 = vpop.xlane.xlu0 %1133
        %v1135 = vsub.f32 %v1131, %v1134
        %v1136 = vmul.f32 %v1135, 1.442695
        %v1137 = vpow.pop %v1136
        %v1138 = vsel %vm964, %v1137, 0.0
        %1139 = vadd.xlane.f32.xlu0 %v1138
        %v1140 = vpop.xlane.xlu0 %1139
        %v1141 = vrcp.pop %v1140
        %v1142 = vmul.f32 %v1137, %v1141
        %v1143 = vpack.c.bf16 %v1142, %v1142
        %1145 = vrot.lane.b32.xlu0 %v963, 120
        %v1146 = vpop.permute.xlu0 %1145
        %v1148 = vsel %vm964, %v1143, 0
        %v1151 = vsel %vm1034, %v1146, 0
        %1153 = vmatprep.subr.bf16.mxu0 0
        %1154 = vmatpush1.bf16.msra.mxu0 %v1151
        %1155 = vmatprep.subr.bf16.mxu0 0
        %1156 = vmatpush1.bf16.msra.mxu0 0
        %1157 = vmatprep.subr.bf16.mxu0 0
        %1158 = vmatpush1.bf16.msra.mxu0 0
        %1159 = vmatprep.subr.bf16.mxu0 0
        %1160 = vmatpush1.bf16.msra.mxu0 0
        %1161 = vmatprep.subr.bf16.mxu0 0
        %1162 = vmatpush1.bf16.msra.mxu0 0
        %1163 = vmatprep.subr.bf16.mxu0 0
        %1164 = vmatpush1.bf16.msra.mxu0 0
        %1165 = vmatprep.subr.bf16.mxu0 0
        %1166 = vmatpush1.bf16.msra.mxu0 0
        %1167 = vmatprep.subr.bf16.mxu0 0
        %1168 = vmatpush1.bf16.msra.mxu0 0
        %1169 = vmatprep.subr.bf16.mxu0 0
        %1170 = vmatpush1.bf16.msra.mxu0 0
        %1171 = vmatprep.subr.bf16.mxu0 0
        %1172 = vmatpush1.bf16.msra.mxu0 0
        %1173 = vmatprep.subr.bf16.mxu0 0
        %1174 = vmatpush1.bf16.msra.mxu0 0
        %1175 = vmatprep.subr.bf16.mxu0 0
        %1176 = vmatpush1.bf16.msra.mxu0 0
        %1177 = vmatprep.subr.bf16.mxu0 0
        %1178 = vmatpush1.bf16.msra.mxu0 0
        %1179 = vmatprep.subr.bf16.mxu0 0
        %1180 = vmatpush1.bf16.msra.mxu0 0
        %1181 = vmatprep.subr.bf16.mxu0 0
        %1182 = vmatpush1.bf16.msra.mxu0 0
        %1183 = vmatprep.subr.bf16.mxu0 0
        %1184 = vmatpush1.bf16.msra.mxu0 0
        %1185 = vmatprep.mubr.bf16.mxu0 0
        %1186 = vmatmul.mubr.bf16.gmra.mrb[0].mxu0 %v1148
        %v1187 = vpop.f32.mrb[0].mxu0
        %v1188 = vadd.f32 0.0, %v1187
        %v1189 = vpop.f32.mrb[0].mxu0
        %v1190 = vpop.f32.mrb[0].mxu0
        %v1191 = vpop.f32.mrb[0].mxu0
        %1192 = vdwg.mxu0
        %1193 = vrot.lane.b32.xlu0 %v961, 112
        %v1194 = vpop.permute.xlu0 %1193
        %1195 = vrot.lane.b32.xlu0 %v962, 112
        %v1196 = vpop.permute.xlu0 %1195
        %v1198 = vsel %vm964, %v1194, 0
        %v1201 = vsel %vm964, %v1196, 0
        %1203 = vmatprep.subr.bf16.mxu0 0
        %1204 = vmatpush1.bf16.xpose.msra.mxu0 %v1201
        %1205 = vmatprep.subr.bf16.mxu0 0
        %1206 = vmatpush1.bf16.xpose.msra.mxu0 0
        %1207 = vmatprep.subr.bf16.mxu0 0
        %1208 = vmatpush1.bf16.xpose.msra.mxu0 0
        %1209 = vmatprep.subr.bf16.mxu0 0
        %1210 = vmatpush1.bf16.xpose.msra.mxu0 0
        %1211 = vmatprep.subr.bf16.mxu0 0
        %1212 = vmatpush1.bf16.xpose.msra.mxu0 0
        %1213 = vmatprep.subr.bf16.mxu0 0
        %1214 = vmatpush1.bf16.xpose.msra.mxu0 0
        %1215 = vmatprep.subr.bf16.mxu0 0
        %1216 = vmatpush1.bf16.xpose.msra.mxu0 0
        %1217 = vmatprep.subr.bf16.mxu0 0
        %1218 = vmatpush1.bf16.xpose.msra.mxu0 0
        %1219 = vmatprep.subr.bf16.mxu0 0
        %1220 = vmatpush1.bf16.xpose.msra.mxu0 0
        %1221 = vmatprep.subr.bf16.mxu0 0
        %1222 = vmatpush1.bf16.xpose.msra.mxu0 0
        %1223 = vmatprep.subr.bf16.mxu0 0
        %1224 = vmatpush1.bf16.xpose.msra.mxu0 0
        %1225 = vmatprep.subr.bf16.mxu0 0
        %1226 = vmatpush1.bf16.xpose.msra.mxu0 0
        %1227 = vmatprep.subr.bf16.mxu0 0
        %1228 = vmatpush1.bf16.xpose.msra.mxu0 0
        %1229 = vmatprep.subr.bf16.mxu0 0
        %1230 = vmatpush1.bf16.xpose.msra.mxu0 0
        %1231 = vmatprep.subr.bf16.mxu0 0
        %1232 = vmatpush1.bf16.xpose.msra.mxu0 0
        %1233 = vmatprep.subr.bf16.mxu0 0
        %1234 = vmatpush1.bf16.xpose.msra.mxu0 0
        %1235 = vmatprep.mubr.bf16.mxu0 0
        %1236 = vmatmul.mubr.bf16.gmra.mrb[0].mxu0 %v1198
        %v1237 = vpop.f32.mrb[0].mxu0
        %v1238 = vadd.f32 0.0, %v1237
        %v1239 = vpop.f32.mrb[0].mxu0
        %v1240 = vpop.f32.mrb[0].mxu0
        %v1241 = vpop.f32.mrb[0].mxu0
        %1242 = vdwg.mxu0
        %v1243 = vmul.f32 %v1238, 0.35355338
        %v1244 = vadd.f32 %v1243, %v1016
        %v1245 = vsel %vm964, %v1244, -inf
        %1246 = vmax.xlane.f32.xlu0 %v1245
        %v1247 = vpop.xlane.xlu0 %1246
        %v1248 = vsub.f32 %v1244, %v1247
        %v1249 = vmul.f32 %v1248, 1.442695
        %v1250 = vpow.pop %v1249
        %v1251 = vsel %vm964, %v1250, 0.0
        %1252 = vadd.xlane.f32.xlu0 %v1251
        %v1253 = vpop.xlane.xlu0 %1252
        %v1254 = vrcp.pop %v1253
        %v1255 = vmul.f32 %v1250, %v1254
        %v1256 = vpack.c.bf16 %v1255, %v1255
        %1257 = vrot.lane.b32.xlu0 %v963, 112
        %v1258 = vpop.permute.xlu0 %1257
        %v1260 = vsel %vm964, %v1256, 0
        %v1263 = vsel %vm1034, %v1258, 0
        %1265 = vmatprep.subr.bf16.mxu0 0
        %1266 = vmatpush1.bf16.msra.mxu0 %v1263
        %1267 = vmatprep.subr.bf16.mxu0 0
        %1268 = vmatpush1.bf16.msra.mxu0 0
        %1269 = vmatprep.subr.bf16.mxu0 0
        %1270 = vmatpush1.bf16.msra.mxu0 0
        %1271 = vmatprep.subr.bf16.mxu0 0
        %1272 = vmatpush1.bf16.msra.mxu0 0
        %1273 = vmatprep.subr.bf16.mxu0 0
        %1274 = vmatpush1.bf16.msra.mxu0 0
        %1275 = vmatprep.subr.bf16.mxu0 0
        %1276 = vmatpush1.bf16.msra.mxu0 0
        %1277 = vmatprep.subr.bf16.mxu0 0
        %1278 = vmatpush1.bf16.msra.mxu0 0
        %1279 = vmatprep.subr.bf16.mxu0 0
        %1280 = vmatpush1.bf16.msra.mxu0 0
        %1281 = vmatprep.subr.bf16.mxu0 0
        %1282 = vmatpush1.bf16.msra.mxu0 0
        %1283 = vmatprep.subr.bf16.mxu0 0
        %1284 = vmatpush1.bf16.msra.mxu0 0
        %1285 = vmatprep.subr.bf16.mxu0 0
        %1286 = vmatpush1.bf16.msra.mxu0 0
        %1287 = vmatprep.subr.bf16.mxu0 0
        %1288 = vmatpush1.bf16.msra.mxu0 0
        %1289 = vmatprep.subr.bf16.mxu0 0
        %1290 = vmatpush1.bf16.msra.mxu0 0
        %1291 = vmatprep.subr.bf16.mxu0 0
        %1292 = vmatpush1.bf16.msra.mxu0 0
        %1293 = vmatprep.subr.bf16.mxu0 0
        %1294 = vmatpush1.bf16.msra.mxu0 0
        %1295 = vmatprep.subr.bf16.mxu0 0
        %1296 = vmatpush1.bf16.msra.mxu0 0
        %1297 = vmatprep.mubr.bf16.mxu0 0
        %1298 = vmatmul.mubr.bf16.gmra.mrb[0].mxu0 %v1260
        %v1299 = vpop.f32.mrb[0].mxu0
        %v1300 = vadd.f32 0.0, %v1299
        %v1301 = vpop.f32.mrb[0].mxu0
        %v1302 = vpop.f32.mrb[0].mxu0
        %v1303 = vpop.f32.mrb[0].mxu0
        %1304 = vdwg.mxu0
        %1305 = vrot.lane.b32.xlu0 %v961, 104
        %v1306 = vpop.permute.xlu0 %1305
        %1307 = vrot.lane.b32.xlu0 %v962, 104
        %v1308 = vpop.permute.xlu0 %1307
        %v1310 = vsel %vm964, %v1306, 0
        %v1313 = vsel %vm964, %v1308, 0
        %1315 = vmatprep.subr.bf16.mxu0 0
        %1316 = vmatpush1.bf16.xpose.msra.mxu0 %v1313
        %1317 = vmatprep.subr.bf16.mxu0 0
        %1318 = vmatpush1.bf16.xpose.msra.mxu0 0
        %1319 = vmatprep.subr.bf16.mxu0 0
        %1320 = vmatpush1.bf16.xpose.msra.mxu0 0
        %1321 = vmatprep.subr.bf16.mxu0 0
        %1322 = vmatpush1.bf16.xpose.msra.mxu0 0
        %1323 = vmatprep.subr.bf16.mxu0 0
        %1324 = vmatpush1.bf16.xpose.msra.mxu0 0
        %1325 = vmatprep.subr.bf16.mxu0 0
        %1326 = vmatpush1.bf16.xpose.msra.mxu0 0
        %1327 = vmatprep.subr.bf16.mxu0 0
        %1328 = vmatpush1.bf16.xpose.msra.mxu0 0
        %1329 = vmatprep.subr.bf16.mxu0 0
        %1330 = vmatpush1.bf16.xpose.msra.mxu0 0
        %1331 = vmatprep.subr.bf16.mxu0 0
        %1332 = vmatpush1.bf16.xpose.msra.mxu0 0
        %1333 = vmatprep.subr.bf16.mxu0 0
        %1334 = vmatpush1.bf16.xpose.msra.mxu0 0
        %1335 = vmatprep.subr.bf16.mxu0 0
        %1336 = vmatpush1.bf16.xpose.msra.mxu0 0
        %1337 = vmatprep.subr.bf16.mxu0 0
        %1338 = vmatpush1.bf16.xpose.msra.mxu0 0
        %1339 = vmatprep.subr.bf16.mxu0 0
        %1340 = vmatpush1.bf16.xpose.msra.mxu0 0
        %1341 = vmatprep.subr.bf16.mxu0 0
        %1342 = vmatpush1.bf16.xpose.msra.mxu0 0
        %1343 = vmatprep.subr.bf16.mxu0 0
        %1344 = vmatpush1.bf16.xpose.msra.mxu0 0
        %1345 = vmatprep.subr.bf16.mxu0 0
        %1346 = vmatpush1.bf16.xpose.msra.mxu0 0
        %1347 = vmatprep.mubr.bf16.mxu0 0
        %1348 = vmatmul.mubr.bf16.gmra.mrb[0].mxu0 %v1310
        %v1349 = vpop.f32.mrb[0].mxu0
        %v1350 = vadd.f32 0.0, %v1349
        %v1351 = vpop.f32.mrb[0].mxu0
        %v1352 = vpop.f32.mrb[0].mxu0
        %v1353 = vpop.f32.mrb[0].mxu0
        %1354 = vdwg.mxu0
        %v1355 = vmul.f32 %v1350, 0.35355338
        %v1356 = vadd.f32 %v1355, %v1016
        %v1357 = vsel %vm964, %v1356, -inf
        %1358 = vmax.xlane.f32.xlu0 %v1357
        %v1359 = vpop.xlane.xlu0 %1358
        %v1360 = vsub.f32 %v1356, %v1359
        %v1361 = vmul.f32 %v1360, 1.442695
        %v1362 = vpow.pop %v1361
        %v1363 = vsel %vm964, %v1362, 0.0
        %1364 = vadd.xlane.f32.xlu0 %v1363
        %v1365 = vpop.xlane.xlu0 %1364
        %v1366 = vrcp.pop %v1365
        %v1367 = vmul.f32 %v1362, %v1366
        %v1368 = vpack.c.bf16 %v1367, %v1367
        %1369 = vrot.lane.b32.xlu0 %v963, 104
        %v1370 = vpop.permute.xlu0 %1369
        %v1372 = vsel %vm964, %v1368, 0
        %v1375 = vsel %vm1034, %v1370, 0
        %1377 = vmatprep.subr.bf16.mxu0 0
        %1378 = vmatpush1.bf16.msra.mxu0 %v1375
        %1379 = vmatprep.subr.bf16.mxu0 0
        %1380 = vmatpush1.bf16.msra.mxu0 0
        %1381 = vmatprep.subr.bf16.mxu0 0
        %1382 = vmatpush1.bf16.msra.mxu0 0
        %1383 = vmatprep.subr.bf16.mxu0 0
        %1384 = vmatpush1.bf16.msra.mxu0 0
        %1385 = vmatprep.subr.bf16.mxu0 0
        %1386 = vmatpush1.bf16.msra.mxu0 0
        %1387 = vmatprep.subr.bf16.mxu0 0
        %1388 = vmatpush1.bf16.msra.mxu0 0
        %1389 = vmatprep.subr.bf16.mxu0 0
        %1390 = vmatpush1.bf16.msra.mxu0 0
        %1391 = vmatprep.subr.bf16.mxu0 0
        %1392 = vmatpush1.bf16.msra.mxu0 0
        %1393 = vmatprep.subr.bf16.mxu0 0
        %1394 = vmatpush1.bf16.msra.mxu0 0
        %1395 = vmatprep.subr.bf16.mxu0 0
        %1396 = vmatpush1.bf16.msra.mxu0 0
        %1397 = vmatprep.subr.bf16.mxu0 0
        %1398 = vmatpush1.bf16.msra.mxu0 0
        %1399 = vmatprep.subr.bf16.mxu0 0
        %1400 = vmatpush1.bf16.msra.mxu0 0
        %1401 = vmatprep.subr.bf16.mxu0 0
        %1402 = vmatpush1.bf16.msra.mxu0 0
        %1403 = vmatprep.subr.bf16.mxu0 0
        %1404 = vmatpush1.bf16.msra.mxu0 0
        %1405 = vmatprep.subr.bf16.mxu0 0
        %1406 = vmatpush1.bf16.msra.mxu0 0
        %1407 = vmatprep.subr.bf16.mxu0 0
        %1408 = vmatpush1.bf16.msra.mxu0 0
        %1409 = vmatprep.mubr.bf16.mxu0 0
        %1410 = vmatmul.mubr.bf16.gmra.mrb[0].mxu0 %v1372
        %v1411 = vpop.f32.mrb[0].mxu0
        %v1412 = vadd.f32 0.0, %v1411
        %v1413 = vpop.f32.mrb[0].mxu0
        %v1414 = vpop.f32.mrb[0].mxu0
        %v1415 = vpop.f32.mrb[0].mxu0
        %1416 = vdwg.mxu0
        %1418 = vrot.lane.b32.xlu0 %v1188, 8
        %v1419 = vpop.permute.xlu0 %1418
        %1422 = vrot.lane.b32.xlu0 %v1300, 16
        %v1423 = vpop.permute.xlu0 %1422
        %1426 = vrot.lane.b32.xlu0 %v1412, 24
        %v1427 = vpop.permute.xlu0 %1426
        %v1429 = vsel %vm964, %v1073, %v1419
        %vm1430 = vcmask 130048
        %v1431 = vsel %vm1430, %v1429, %v1423
        %vm1432 = vcmask 195584
        %v1433 = vsel %vm1432, %v1431, %v1427
        %1435 = vset.pattern.permute.xlu0 0
        %1436 = vperm.xlu0 %1435, %v788
        %v1437 = vpop.permute.xlu0 %1436
        %v1439 = vmul.f32 %v1433, %v1437
        %v1440 = vpack.c.bf16 %v1439, %v1439
        %v1441 = vld [vmem:[%s618] sm:$0xf]
        %v1442 = vld [vmem:[%s618 + $0x4] sm:$0xf]
        %v1443 = vld [vmem:[%s618 + $0x8] sm:$0xf]
        %v1444 = vld [vmem:[%s618 + $0xc] sm:$0xf]
        %v1449 = vunpack.c.l.b16 %v1441
        %v1450 = vunpack.c.l.b16 %v1442
        %v1451 = vunpack.c.l.b16 %v1443
        %v1452 = vunpack.c.l.b16 %v1444
        %v1453 = vpack.c.b16 %v1450, %v1449
        %v1454 = vpack.c.b16 %v1452, %v1451
        %v1458 = vsel %vm805, %v1440, 0
        %1460 = vmatprep.subr.bf16.mxu0 0
        %1461 = vmatpush1.bf16.msra.mxu0 %v1453
        %1462 = vmatprep.subr.bf16.mxu0 0
        %1463 = vmatpush1.bf16.msra.mxu0 %v1454
        %1464 = vmatprep.subr.bf16.mxu0 0
        %1465 = vmatpush1.bf16.msra.mxu0 0
        %1466 = vmatprep.subr.bf16.mxu0 0
        %1467 = vmatpush1.bf16.msra.mxu0 0
        %1468 = vmatprep.subr.bf16.mxu0 0
        %1469 = vmatpush1.bf16.msra.mxu0 0
        %1470 = vmatprep.subr.bf16.mxu0 0
        %1471 = vmatpush1.bf16.msra.mxu0 0
        %1472 = vmatprep.subr.bf16.mxu0 0
        %1473 = vmatpush1.bf16.msra.mxu0 0
        %1474 = vmatprep.subr.bf16.mxu0 0
        %1475 = vmatpush1.bf16.msra.mxu0 0
        %1476 = vmatprep.subr.bf16.mxu0 0
        %1477 = vmatpush1.bf16.msra.mxu0 0
        %1478 = vmatprep.subr.bf16.mxu0 0
        %1479 = vmatpush1.bf16.msra.mxu0 0
        %1480 = vmatprep.subr.bf16.mxu0 0
        %1481 = vmatpush1.bf16.msra.mxu0 0
        %1482 = vmatprep.subr.bf16.mxu0 0
        %1483 = vmatpush1.bf16.msra.mxu0 0
        %1484 = vmatprep.subr.bf16.mxu0 0
        %1485 = vmatpush1.bf16.msra.mxu0 0
        %1486 = vmatprep.subr.bf16.mxu0 0
        %1487 = vmatpush1.bf16.msra.mxu0 0
        %1488 = vmatprep.subr.bf16.mxu0 0
        %1489 = vmatpush1.bf16.msra.mxu0 0
        %1490 = vmatprep.subr.bf16.mxu0 0
        %1491 = vmatpush1.bf16.msra.mxu0 0
        %1492 = vmatprep.mubr.bf16.mxu0 0
        %1493 = vmatmul.mubr.bf16.gmra.mrb[0].mxu0 %v1458
        %v1494 = vpop.f32.mrb[0].mxu0
        %v1495 = vadd.f32 %v785, %v1494
        %v1496 = vpop.f32.mrb[0].mxu0
        %v1497 = vpop.f32.mrb[0].mxu0
        %v1498 = vpop.f32.mrb[0].mxu0
        %1499 = vdwg.mxu0
        %v1500 = vld [vmem:[%s767] sm:$0x1]
        %v1501 = vld [vmem:[%s770] sm:$0x1]
        %v1502 = vsel %vm805, %v1495, 0.0
        %1503 = vadd.xlane.f32.xlu0 %v1502
        %v1504 = vpop.xlane.xlu0 %1503
        %v1505 = vrcp.pop 32.0
        %v1506 = vmul.f32 %v1504, %v1505
        %v1507 = vsub.f32 %v1495, %v1506
        %v1508 = vmul.f32 %v1507, %v1507
        %v1509 = vsel %vm805, %v1508, 0.0
        %1510 = vadd.xlane.f32.xlu0 %v1509
        %v1511 = vpop.xlane.xlu0 %1510
        %v1512 = vmul.f32 %v1511, %v1505
        %v1513 = vadd.f32 %v1512, 1e-05
        %v1514 = vrsqrt.pop %v1513
        %v1515 = vmul.f32 %v1507, %v1514
        %v1517 = vlaneseq
        %v1518 = vshrl.u32 %v1517, 7
        %v1519 = vsub.s32 0, %v1518
        %v1520 = vrot.slane %v1500, %v1519
        %v1522 = vmul.f32 %v1515, %v1520
        %v1524 = vlaneseq
        %v1525 = vshrl.u32 %v1524, 7
        %v1526 = vsub.s32 0, %v1525
        %v1527 = vrot.slane %v1501, %v1526
        %v1529 = vadd.f32 %v1522, %v1527
        %v1530 = vpack.c.bf16 %v1529, %v1529
        %v1531 = vld [vmem:[%s627] sm:$0xf]
        %v1532 = vld [vmem:[%s627 + $0x4] sm:$0xf]
        %v1533 = vld [vmem:[%s627 + $0x8] sm:$0xf]
        %v1534 = vld [vmem:[%s627 + $0xc] sm:$0xf]
        %v1535 = vld [vmem:[%s756] sm:$0x1]
        %v1537 = vlaneseq
        %v1538 = vshrl.u32 %v1537, 7
        %v1539 = vsub.s32 0, %v1538
        %v1540 = vrot.slane %v1535, %v1539
        %v1546 = vunpack.c.l.b16 %v1531
        %v1547 = vunpack.c.l.b16 %v1532
        %v1548 = vunpack.c.l.b16 %v1533
        %v1549 = vunpack.c.l.b16 %v1534
        %v1550 = vpack.c.b16 %v1547, %v1546
        %v1551 = vpack.c.b16 %v1549, %v1548
        %v1555 = vsel %vm805, %v1530, 0
        %1557 = vmatprep.subr.bf16.mxu0 0
        %1558 = vmatpush1.bf16.msra.mxu0 %v1550
        %1559 = vmatprep.subr.bf16.mxu0 0
        %1560 = vmatpush1.bf16.msra.mxu0 %v1551
        %1561 = vmatprep.subr.bf16.mxu0 0
        %1562 = vmatpush1.bf16.msra.mxu0 0
        %1563 = vmatprep.subr.bf16.mxu0 0
        %1564 = vmatpush1.bf16.msra.mxu0 0
        %1565 = vmatprep.subr.bf16.mxu0 0
        %1566 = vmatpush1.bf16.msra.mxu0 0
        %1567 = vmatprep.subr.bf16.mxu0 0
        %1568 = vmatpush1.bf16.msra.mxu0 0
        %1569 = vmatprep.subr.bf16.mxu0 0
        %1570 = vmatpush1.bf16.msra.mxu0 0
        %1571 = vmatprep.subr.bf16.mxu0 0
        %1572 = vmatpush1.bf16.msra.mxu0 0
        %1573 = vmatprep.subr.bf16.mxu0 0
        %1574 = vmatpush1.bf16.msra.mxu0 0
        %1575 = vmatprep.subr.bf16.mxu0 0
        %1576 = vmatpush1.bf16.msra.mxu0 0
        %1577 = vmatprep.subr.bf16.mxu0 0
        %1578 = vmatpush1.bf16.msra.mxu0 0
        %1579 = vmatprep.subr.bf16.mxu0 0
        %1580 = vmatpush1.bf16.msra.mxu0 0
        %1581 = vmatprep.subr.bf16.mxu0 0
        %1582 = vmatpush1.bf16.msra.mxu0 0
        %1583 = vmatprep.subr.bf16.mxu0 0
        %1584 = vmatpush1.bf16.msra.mxu0 0
        %1585 = vmatprep.subr.bf16.mxu0 0
        %1586 = vmatpush1.bf16.msra.mxu0 0
        %1587 = vmatprep.subr.bf16.mxu0 0
        %1588 = vmatpush1.bf16.msra.mxu0 0
        %1589 = vmatprep.mubr.bf16.mxu0 0
        %1590 = vmatmul.mubr.bf16.gmra.mrb[0].mxu0 %v1555
        %v1591 = vpop.f32.mrb[0].mxu0
        %v1592 = vadd.f32 %v1540, %v1591
        %v1593 = vpop.f32.mrb[0].mxu0
        %v1594 = vpop.f32.mrb[0].mxu0
        %v1595 = vpop.f32.mrb[0].mxu0
        %1596 = vdwg.mxu0
        %v1597 = vmul.f32 %v1592, 0.5
        %v1598 = vmul.f32 %v1592, 0.044715
        %v1599 = vmul.f32 %v1598, %v1592
        %v1600 = vmul.f32 %v1599, %v1592
        %v1601 = vadd.f32 %v1592, %v1600
        %v1602 = vmul.f32 %v1601, 0.7978846
        %v1603 = vtanh.pop %v1602
        %v1604 = vadd.f32 %v1603, 1.0
        %v1605 = vmul.f32 %v1597, %v1604
        %v1606 = vpack.c.bf16 %v1605, %v1605
        %v1607 = vld [vmem:[%s761] sm:$0xf]
        %v1608 = vld [vmem:[%s761 + $0x4] sm:$0xf]
        %v1609 = vld [vmem:[%s761 + $0x8] sm:$0xf]
        %v1610 = vld [vmem:[%s761 + $0xc] sm:$0xf]
        %v1611 = vld [vmem:[%s761 + $0x10] sm:$0xf]
        %v1612 = vld [vmem:[%s761 + $0x14] sm:$0xf]
        %v1613 = vld [vmem:[%s761 + $0x18] sm:$0xf]
        %v1614 = vld [vmem:[%s761 + $0x1c] sm:$0xf]
        %v1615 = vld [vmem:[%s764] sm:$0x1]
        %v1617 = vlaneseq
        %v1618 = vshrl.u32 %v1617, 7
        %v1619 = vsub.s32 0, %v1618
        %v1620 = vrot.slane %v1615, %v1619
        %v1630 = vunpack.c.l.b16 %v1607
        %v1631 = vunpack.c.l.b16 %v1608
        %v1632 = vunpack.c.l.b16 %v1609
        %v1633 = vunpack.c.l.b16 %v1610
        %v1634 = vunpack.c.l.b16 %v1611
        %v1635 = vunpack.c.l.b16 %v1612
        %v1636 = vunpack.c.l.b16 %v1613
        %v1637 = vunpack.c.l.b16 %v1614
        %v1638 = vpack.c.b16 %v1631, %v1630
        %v1639 = vpack.c.b16 %v1633, %v1632
        %v1640 = vpack.c.b16 %v1635, %v1634
        %v1641 = vpack.c.b16 %v1637, %v1636
        %vm1646 = vcmask 523264
        %v1648 = vsel %vm1646, %v1606, 0
        %1650 = vmatprep.subr.bf16.mxu0 0
        %1651 = vmatpush1.bf16.msra.mxu0 %v1638
        %1652 = vmatprep.subr.bf16.mxu0 0
        %1653 = vmatpush1.bf16.msra.mxu0 %v1639
        %1654 = vmatprep.subr.bf16.mxu0 0
        %1655 = vmatpush1.bf16.msra.mxu0 %v1640
        %1656 = vmatprep.subr.bf16.mxu0 0
        %1657 = vmatpush1.bf16.msra.mxu0 %v1641
        %1658 = vmatprep.subr.bf16.mxu0 0
        %1659 = vmatpush1.bf16.msra.mxu0 0
        %1660 = vmatprep.subr.bf16.mxu0 0
        %1661 = vmatpush1.bf16.msra.mxu0 0
        %1662 = vmatprep.subr.bf16.mxu0 0
        %1663 = vmatpush1.bf16.msra.mxu0 0
        %1664 = vmatprep.subr.bf16.mxu0 0
        %1665 = vmatpush1.bf16.msra.mxu0 0
        %1666 = vmatprep.subr.bf16.mxu0 0
        %1667 = vmatpush1.bf16.msra.mxu0 0
        %1668 = vmatprep.subr.bf16.mxu0 0
        %1669 = vmatpush1.bf16.msra.mxu0 0
        %1670 = vmatprep.subr.bf16.mxu0 0
        %1671 = vmatpush1.bf16.msra.mxu0 0
        %1672 = vmatprep.subr.bf16.mxu0 0
        %1673 = vmatpush1.bf16.msra.mxu0 0
        %1674 = vmatprep.subr.bf16.mxu0 0
        %1675 = vmatpush1.bf16.msra.mxu0 0
        %1676 = vmatprep.subr.bf16.mxu0 0
        %1677 = vmatpush1.bf16.msra.mxu0 0
        %1678 = vmatprep.subr.bf16.mxu0 0
        %1679 = vmatpush1.bf16.msra.mxu0 0
        %1680 = vmatprep.subr.bf16.mxu0 0
        %1681 = vmatpush1.bf16.msra.mxu0 0
        %1682 = vmatprep.mubr.bf16.mxu0 0
        %1683 = vmatmul.mubr.bf16.gmra.mrb[0].mxu0 %v1648
        %v1684 = vpop.f32.mrb[0].mxu0
        %v1685 = vadd.f32 %v1620, %v1684
        %v1686 = vpop.f32.mrb[0].mxu0
        %v1687 = vpop.f32.mrb[0].mxu0
        %v1688 = vpop.f32.mrb[0].mxu0
        %1689 = vdwg.mxu0
        %v1690 = vadd.f32 %v1685, %v1529
        %v1691 = vld [vmem:[%s773] sm:$0x1]
        %v1692 = vld [vmem:[%s776] sm:$0x1]
        %v1693 = vsel %vm805, %v1690, 0.0
        %1694 = vadd.xlane.f32.xlu0 %v1693
        %v1695 = vpop.xlane.xlu0 %1694
        %v1696 = vmul.f32 %v1695, %v1505
        %v1697 = vsub.f32 %v1690, %v1696
        %v1698 = vmul.f32 %v1697, %v1697
        %v1699 = vsel %vm805, %v1698, 0.0
        %1700 = vadd.xlane.f32.xlu0 %v1699
        %v1701 = vpop.xlane.xlu0 %1700
        %v1702 = vmul.f32 %v1701, %v1505
        %v1703 = vadd.f32 %v1702, 1e-05
        %v1704 = vrsqrt.pop %v1703
        %v1705 = vmul.f32 %v1697, %v1704
        %v1707 = vlaneseq
        %v1708 = vshrl.u32 %v1707, 7
        %v1709 = vsub.s32 0, %v1708
        %v1710 = vrot.slane %v1691, %v1709
        %v1712 = vmul.f32 %v1705, %v1710
        %v1714 = vlaneseq
        %v1715 = vshrl.u32 %v1714, 7
        %v1716 = vsub.s32 0, %v1715
        %v1717 = vrot.slane %v1692, %v1716
        %v1719 = vadd.f32 %v1712, %v1717
        %v1720 = vmul.f32 %v1719, %v1437
        %1721 = vst.msk [vmem:[%s727] sm:$0xff] %vm805, %v1720
        %s1722 = sand.u32 %s445, 1
        %s1723 = scalar_lea.sflag [#allocation4], %s1722
        %s1724 = sand.u32 %s445, 1
        %s1725 = smul.addr %s1724, 8
        %s1726 = scalar_lea.vmem [#allocation7], %s1725
        // Predicated region
        $region93: #{tpu_custom_call.1} parent=79 // pred_check
          %p1727 = pneg %p455
        $region94: #{tpu_custom_call.1} parent=79 // pred_check_branch
          %1729 = sbr.rel (%p1727) target = $region96
        $region95: #{tpu_custom_call.1} parent=79 // pred_region
          %s1731 = ssub.s32 128, 128
          %1732 = vsyncadd %s1723, %s1731
          %s1733 = smul.addr %s39, 128
          %s1734 = scalar_lea.hbm %s15, %s1733
          %s1736 = sshll.u32 %s1726, 4
          %s1737 = int_to_ptr.vmem [resolvable:$true] %s1736
          %1739 = dma.vmem_to_hbm [thread:$0]  %s1737, 128, %s1734, %s1723
        $region96: #{tpu_custom_call.1} parent=79 // pred_fallthru
          _
      $region80: #{tpu_custom_call.1} parent=5 // pred_fallthru
        _
      %p1740 = scmp.le.s32.totalorder 2, %s30
      // Predicated region
      $region97: #{tpu_custom_call.1} parent=5 // pred_check
        %p1741 = pneg %p1740
      $region98: #{tpu_custom_call.1} parent=5 // pred_check_branch
        %1743 = sbr.rel (%p1741) target = $region100
      $region99: #{tpu_custom_call.1} parent=5 // pred_region
        %s1744 = ssub.s32 %s30, 2
        // Predicated region
        $region101: #{tpu_custom_call.1} parent=99 // pred_check
          %p1745 = pneg %p461
        $region102: #{tpu_custom_call.1} parent=99 // pred_check_branch
          %1747 = sbr.rel (%p1745) target = $region104
        $region103: #{tpu_custom_call.1} parent=99 // pred_region
          %s1748 = sand.u32 %s446, 1
          %s1749 = scalar_lea.sflag [#allocation4], %s1748
          %s1750 = sand.u32 %s446, 1
          %s1751 = smul.addr %s1750, 8
          %s1752 = scalar_lea.vmem [#allocation7], %s1751
          %1753 = dma.done %s1749, 128
        $region104: #{tpu_custom_call.1} parent=99 // pred_fallthru
          _
      $region100: #{tpu_custom_call.1} parent=5 // pred_fallthru
        _
    $region6: #{tpu_custom_call.1} parent=1 // loop_footer
      %s34 = sadd.s32 1, %s30
    $region7: #{tpu_custom_call.1} parent=1 // loop_footer_branch
      %29 = sbr.rel target = $region3
    $region8: #{tpu_custom_call.1} parent=1 // loop_exit
      _
    %1754 = vsyncpa [#allocation3], 1
    %s1755 = scalar_lea.sflag [#allocation3], 1
    %1756 = vsyncpa %s1755, 1
    %1757 = vsyncpa [#allocation6], 1
    %s1758 = scalar_lea.sflag [#allocation6], 1
    %1759 = vsyncpa %s1758, 1
    %1760 = vsyncpa [#allocation4], 1
    %s1761 = scalar_lea.sflag [#allocation4], 1
    %1762 = vsyncpa %s1761, 1

</llo_original>
